<compile_context>
chip_gen: v6e
topology: v6e:2x2x1
jax: 0.10.0
libtpu: 0.0.40
codegen_flags: <defaults>
</compile_context>

<pallas_src>
import functools

import jax
import jax.numpy as jnp
import numpy as np
from jax.experimental import pallas as pl
from jax.experimental.pallas import tpu as pltpu

BN_EPS = 1e-5  # PyTorch BatchNorm default eps


# ----------------------------------------------------------------------------
# helpers
# ----------------------------------------------------------------------------
def _round_up(v, m):
    return ((v + m - 1) // m) * m


def _pad_last(a, cols):
    return jnp.pad(a, [(0, 0)] * (a.ndim - 1) + [(0, cols - a.shape[-1])])


def _pad2(a, rows, cols):
    return jnp.pad(a, ((0, rows - a.shape[0]), (0, cols - a.shape[1])))


def _vmem_limit(est_bytes):
    # Generation-aware scoped-VMEM limit: ~3/4 of physical VMEM (64 MiB on v7x,
    # 128 MiB on v5e/v6e) leaves headroom for compiler scratch / semaphores.
    try:
        cap = int(pltpu.get_tpu_info().vmem_capacity_bytes)
    except Exception:
        cap = 64 * 1024 * 1024
    ceiling = (cap * 3) // 4
    return int(min(max(2 * est_bytes, 32 * 1024 * 1024), ceiling))


def _pick_tq(n_pad, ns_pad, target):
    # Bound ~3 live f32 copies of the (tq, ns_pad) score matrix to ~12 MiB so the
    # resident phi_t / g blocks plus scores stay inside v7x's 64 MiB VMEM.
    budget_rows = max(128, (12 << 20) // (3 * 4 * ns_pad))
    want = min(target, budget_rows, n_pad)
    for cand in (1024, 512, 256, 128, 64, 32, 16, 8):
        if cand <= want and n_pad % cand == 0:
            return cand
    return n_pad


def _pick_tns(ns_pad, cp):
    # Keep the (4, tns, Cp) f32 x block around <= ~8 MiB (x2 for double buffering).
    budget_rows = max(128, (8 << 20) // (16 * cp))
    for cand in (1024, 512, 256, 128):
        if cand <= min(ns_pad, budget_rows) and ns_pad % cand == 0:
            return cand
    return 128


# ----------------------------------------------------------------------------
# Kernel 1: phi / g 1x1 projections with the 2x2 max-pool fused; phi stored transposed
# ----------------------------------------------------------------------------
def _proj_pool_kernel(x_ref, pw_ref, pb_ref, gw_ref, gb_ref, phit_ref, g_ref):
    # x_ref: (4, TNs, Cp) -- the four 2x2 pool-phase copies of one pooled-spatial tile.
    # MaxPool2d(2) is applied AFTER the 1x1 conv in the PyTorch module, so the pool is
    # fused as an elementwise max over the per-phase conv outputs (bias added after the
    # max; max(v) + b == max(v + b)).
    x = x_ref[...].astype(pw_ref.dtype)            # MXU operand dtype (f32 or bf16)

    def conv_pool(w, b):
        r = jnp.dot(x[0], w, preferred_element_type=jnp.float32)
        for p in range(1, 4):
            r = jnp.maximum(r, jnp.dot(x[p], w, preferred_element_type=jnp.float32))
        return r + b                               # (TNs, Cip), f32

    phi = conv_pool(pw_ref[...], pb_ref[...])
    # Store pooled phi transposed (XLU slot has slack here) so kernel 2's score matmul
    # is a plain NN matmul and no XLA swapaxes pass is needed between the two kernels.
    phit_ref[...] = phi.T.astype(phit_ref.dtype)   # (Cip, TNs)

    g = conv_pool(gw_ref[...], gb_ref[...])
    g_ref[...] = g.astype(g_ref.dtype)             # (TNs, Cip)


# ----------------------------------------------------------------------------
# Kernel 2: theta proj + scores + softmax + @g + W(+BN) + residual, per query tile
# ----------------------------------------------------------------------------
def _attn_kernel(x_ref, tw_ref, tb_ref, phit_ref, g_ref, mask_ref, ww_ref, wb_ref,
                 out_ref, *, approx_recip):
    x = x_ref[...]                                                # (TQ, Cp), f32
    # theta projection fused here: x is already resident for the residual, so this
    # trades one small MXU matmul per tile for the full-resolution theta HBM traffic.
    theta = jnp.dot(x.astype(tw_ref.dtype), tw_ref[...],
                    preferred_element_type=jnp.float32) + tb_ref[...]
    f = jnp.dot(theta.astype(phit_ref.dtype), phit_ref[...],
                preferred_element_type=jnp.float32)               # (TQ, Ns_pad)
    f = f + mask_ref[...]                                         # -1e30 on padded keys
    f = f - jnp.max(f, axis=-1, keepdims=True)                    # softmax in f32
    p = jnp.exp(f)
    s = jnp.sum(p, axis=-1, keepdims=True)
    y = jnp.dot(p.astype(g_ref.dtype), g_ref[...],
                preferred_element_type=jnp.float32)               # (TQ, Ci)
    # Normalize AFTER the value matmul: scales (TQ, Ci) instead of (TQ, Ns_pad).
    if approx_recip:
        y = y * pl.reciprocal(s, approx=True)                     # EUP slot
    else:
        y = y / s
    # W 1x1 conv with the BatchNorm affine pre-folded by the wrapper, then residual.
    w = jnp.dot(y.astype(ww_ref.dtype), ww_ref[...],
                preferred_element_type=jnp.float32) + wb_ref[...]
    out_ref[...] = (w + x).astype(out_ref.dtype)


# ----------------------------------------------------------------------------
# Wrapper
# ----------------------------------------------------------------------------
def non_local_block_2d(x_nchw, params, *, compute_dtype=jnp.float32,
                       tq_target=256, approx_softmax_recip=True):
    B, C, H, W = x_nchw.shape
    assert H % 2 == 0 and W % 2 == 0, "MaxPool2d(2) sub-sampling path assumes even H, W"
    Ci = params["theta_w"].shape[1]
    Hs, Ws = H // 2, W // 2
    Ns = Hs * Ws
    Cp, Cip = _round_up(C, 128), _round_up(Ci, 128)   # lane-dense channel padding
    Ns_pad = _round_up(Ns, 128)                       # lane-dense key dimension
    N_pad = 4 * Ns_pad                                # query rows (multiple of 512)
    cdt = compute_dtype
    csz = jnp.dtype(cdt).itemsize

    # NCHW -> (B, 4, Ns_pad, Cp): phase-major (dh, dw) x pooled-spatial (hs, ws) x C.
    # With this layout the 2x2 pool in kernel 1 is a max over the explicit phase axis,
    # and the flat (B, N_pad, Cp) view (a free reshape) is the query/residual layout.
    x4 = x_nchw.reshape(B, C, Hs, 2, Ws, 2)
    x4 = jnp.transpose(x4, (0, 3, 5, 2, 4, 1)).reshape(B, 4, Ns, C)
    x4 = jnp.pad(x4.astype(jnp.float32),
                 ((0, 0), (0, 0), (0, Ns_pad - Ns), (0, Cp - C)))
    x_flat = x4.reshape(B, N_pad, Cp)

    # Parameters: zero-pad channel dims, fold BatchNorm into W, cast MXU operands.
    tw = _pad2(params["theta_w"], Cp, Cip).astype(cdt)
    pw = _pad2(params["phi_w"], Cp, Cip).astype(cdt)
    gw = _pad2(params["g_w"], Cp, Cip).astype(cdt)
    tb = _pad_last(params["theta_b"].astype(jnp.float32), Cip)
    pb = _pad_last(params["phi_b"].astype(jnp.float32), Cip)
    gb = _pad_last(params["g_b"].astype(jnp.float32), Cip)
    # General inference-mode BN fold: (v - running_mean) * gamma / sqrt(var + eps) + beta
    # TODO(synk): training-mode BatchNorm (batch statistics / running-stat updates).
    scale = params["bn_gamma"] / jnp.sqrt(params["bn_var"] + BN_EPS)          # (1, C)
    ww = _pad2(params["W_w"] * scale, Cip, Cp).astype(cdt)
    wb = _pad_last(((params["W_b"] - params["bn_mean"]) * scale
                    + params["bn_beta"]).astype(jnp.float32), Cp)

    # Additive mask killing padded key columns in the softmax.
    key_mask = jnp.where(jnp.arange(Ns_pad) < Ns, 0.0, -1e30)
    key_mask = key_mask.astype(jnp.float32).reshape(1, Ns_pad)

    # ---- kernel 1: phi / g projections + fused 2x2 max-pool, tiled over (B, Ns) -----
    tns = _pick_tns(Ns_pad, Cp)
    est1 = (2 * 4 * tns * Cp * 4            # x block (double-buffered)
            + 2 * 2 * Cp * Cip * csz        # phi/g weights
            + 2 * 2 * 2 * tns * Cip * csz   # phi_t / g output blocks
            + 2 * 4 * tns * Cip * 4)        # matmul intermediates
    phi_t, g_p = pl.pallas_call(
        _proj_pool_kernel,
        grid=(B, Ns_pad // tns),
        in_specs=[
            pl.BlockSpec((None, 4, tns, Cp), lambda b, s: (b, 0, s, 0)),
            pl.BlockSpec((Cp, Cip), lambda b, s: (0, 0)),
            pl.BlockSpec((1, Cip), lambda b, s: (0, 0)),
            pl.BlockSpec((Cp, Cip), lambda b, s: (0, 0)),
            pl.BlockSpec((1, Cip), lambda b, s: (0, 0)),
        ],
        out_specs=[
            pl.BlockSpec((None, Cip, tns), lambda b, s: (b, 0, s)),
            pl.BlockSpec((None, tns, Cip), lambda b, s: (b, s, 0)),
        ],
        out_shape=[
            jax.ShapeDtypeStruct((B, Cip, Ns_pad), cdt),   # pooled phi, pre-transposed
            jax.ShapeDtypeStruct((B, Ns_pad, Cip), cdt),   # pooled g
        ],
        compiler_params=pltpu.CompilerParams(
            dimension_semantics=("parallel", "parallel"),
            vmem_limit_bytes=_vmem_limit(est1)),
    )(x4, pw, pb, gw, gb)

    # ---- kernel 2: fused theta + attention + W(+BN) + residual, query-tiled ---------
    # TODO(synk): for very large pooled key counts (Ns_pad >= ~2048) switch to a
    #             flash-style online softmax over key chunks instead of materializing
    #             the full (tq, Ns_pad) score matrix.
    tq = _pick_tq(N_pad, Ns_pad, tq_target)
    resident = 2 * Ns_pad * Cip * csz      # phi_t + g, single copy
    # These blocks only change at batch boundaries; drop to single buffering when
    # double-buffering them would eat meaningful VMEM (v7x headroom -> larger tq).
    resident_kw = {"pipeline_mode": pl.Buffered(1)} if resident > (8 << 20) else {}
    est2 = (2 * 2 * tq * Cp * 4                      # x in + out f32 blocks
            + (2 if resident_kw else 4) * Ns_pad * Cip * csz
            + 2 * 2 * Cp * Cip * csz                 # theta / W weights
            + 3 * tq * Ns_pad * 4                    # score-matrix live copies
            + 2 * tq * Cip * 4)
    z_flat = pl.pallas_call(
        functools.partial(_attn_kernel, approx_recip=approx_softmax_recip),
        grid=(B, N_pad // tq),
        in_specs=[
            pl.BlockSpec((None, tq, Cp), lambda b, q: (b, q, 0)),
            pl.BlockSpec((Cp, Cip), lambda b, q: (0, 0)),
            pl.BlockSpec((1, Cip), lambda b, q: (0, 0)),
            pl.BlockSpec((None, Cip, Ns_pad), lambda b, q: (b, 0, 0), **resident_kw),
            pl.BlockSpec((None, Ns_pad, Cip), lambda b, q: (b, 0, 0), **resident_kw),
            pl.BlockSpec((1, Ns_pad), lambda b, q: (0, 0)),
            pl.BlockSpec((Cip, Cp), lambda b, q: (0, 0)),
            pl.BlockSpec((1, Cp), lambda b, q: (0, 0)),
        ],
        out_specs=pl.BlockSpec((None, tq, Cp), lambda b, q: (b, q, 0)),
        out_shape=jax.ShapeDtypeStruct((B, N_pad, Cp), jnp.float32),
        compiler_params=pltpu.CompilerParams(
            dimension_semantics=("parallel", "parallel"),
            vmem_limit_bytes=_vmem_limit(est2)),
    )(x_flat, tw, tb, phi_t, g_p, key_mask, ww, wb)

    # Back to NCHW: drop Ns / channel padding, undo the phase-major permutation.
    z = z_flat.reshape(B, 2, 2, Ns_pad, Cp)[:, :, :, :Ns, :C]
    z = z.reshape(B, 2, 2, Hs, Ws, C)
    z = jnp.transpose(z, (0, 5, 3, 1, 4, 2)).reshape(B, C, H, W)
    return z


# ----------------------------------------------------------------------------
# Pure-JAX reference (same math).  compute_dtype mimics the kernel's MXU operand
# casting so the bf16 path can be checked against its own intended numerics.
# ----------------------------------------------------------------------------
def reference(x_nchw, params, compute_dtype=jnp.float32):
    cdt = compute_dtype
    B, C, H, W = x_nchw.shape
    Ci = params["theta_w"].shape[1]
    xf = jnp.transpose(x_nchw, (0, 2, 3, 1)).reshape(B, H * W, C)

    def mm(a, w):
        return jnp.dot(a.astype(cdt), w.astype(cdt),
                       preferred_element_type=jnp.float32)

    theta = (mm(xf, params["theta_w"]) + params["theta_b"]).astype(cdt)
    phi = mm(xf, params["phi_w"]) + params["phi_b"]
    g = mm(xf, params["g_w"]) + params["g_b"]

    def pool(t):
        t = t.reshape(B, H, W, Ci).reshape(B, H // 2, 2, W // 2, 2, Ci)
        return jnp.max(t, axis=(2, 4)).reshape(B, -1, Ci)

    phi = pool(phi).astype(cdt)
    g = pool(g).astype(cdt)
    f = jnp.einsum("bnc,bmc->bnm", theta, phi, preferred_element_type=jnp.float32)
    p = jax.nn.softmax(f, axis=-1).astype(cdt)
    y = jnp.einsum("bnm,bmc->bnc", p, g, preferred_element_type=jnp.float32)
    scale = params["bn_gamma"] / jnp.sqrt(params["bn_var"] + BN_EPS)
    w_eff = (params["W_w"] * scale).astype(cdt)
    b_eff = (params["W_b"] - params["bn_mean"]) * scale + params["bn_beta"]
    w = jnp.dot(y.astype(cdt), w_eff, preferred_element_type=jnp.float32) + b_eff
    z = w + xf
    return jnp.transpose(z.reshape(B, H, W, C), (0, 3, 1, 2))


def make_params(key, in_channels, inter_channels):
    C, Ci = in_channels, inter_channels
    ks = jax.random.split(key, 12)
    # Conv weights ~ normal(0, sqrt(2/n)), n = k*k*out_channels (as in __init__).
    # Weights are stored transposed relative to PyTorch (C_in, C_out) for x @ w.
    std_proj = np.sqrt(2.0 / Ci)
    std_w = np.sqrt(2.0 / C)
    params = {
        "theta_w": jax.random.normal(ks[0], (C, Ci), jnp.float32) * std_proj,
        "theta_b": jax.random.normal(ks[1], (1, Ci), jnp.float32) * 0.1,
        "phi_w": jax.random.normal(ks[2], (C, Ci), jnp.float32) * std_proj,
        "phi_b": jax.random.normal(ks[3], (1, Ci), jnp.float32) * 0.1,
        "g_w": jax.random.normal(ks[4], (C, Ci), jnp.float32) * std_proj,
        "g_b": jax.random.normal(ks[5], (1, Ci), jnp.float32) * 0.1,
        "W_w": jax.random.normal(ks[6], (Ci, C), jnp.float32) * std_w,
        "W_b": jax.random.normal(ks[7], (1, C), jnp.float32) * 0.1,
        # NOTE: the PyTorch __init__ zeroes the BN weight/bias (so z == x at init);
        # nonzero affine + nontrivial running stats are used here to exercise the full
        # BN-folding path.
        "bn_gamma": jax.random.normal(ks[8], (1, C), jnp.float32) * 0.5 + 1.0,
        "bn_beta": jax.random.normal(ks[9], (1, C), jnp.float32) * 0.1,
        "bn_mean": jax.random.normal(ks[10], (1, C), jnp.float32) * 0.2,
        "bn_var": jnp.abs(jax.random.normal(ks[11], (1, C), jnp.float32)) * 0.5 + 0.75,
    }
    return params


if __name__ == "__main__":
    B, C, H, W = 2, 4, 16, 16          # in_channels=4 -> inter_channels=2
    Ci = max(C // 2, 1)

    key = jax.random.PRNGKey(0)
    kx, kp = jax.random.split(key)
    x = jax.random.normal(kx, (B, C, H, W), jnp.float32)
    params = make_params(kp, C, Ci)

    # Strict f32 check (exact softmax division), small query tile so the (B, N//TQ)
    # grid and the per-batch-resident phi_t/g blocks are exercised (grid = (2, 4)).
    z32 = jax.block_until_ready(
        non_local_block_2d(x, params, compute_dtype=jnp.float32,
                           tq_target=128, approx_softmax_recip=False))
    z_ref32 = jax.block_until_ready(reference(x, params, jnp.float32))
    np.testing.assert_allclose(np.asarray(z32), np.asarray(z_ref32),
                               rtol=1e-5, atol=1e-5)
    assert z32.shape == x.shape and z32.dtype == x.dtype

    # Production path: bf16 MXU operands + EUP approximate-reciprocal softmax,
    # checked against a bf16-operand reference (tolerance covers the approximate
    # reciprocal plus bf16 requantization of the softmax weights).
    zbf = jax.block_until_ready(
        non_local_block_2d(x, params, compute_dtype=jnp.bfloat16))
    z_refbf = jax.block_until_ready(reference(x, params, jnp.bfloat16))
    np.testing.assert_allclose(np.asarray(zbf), np.asarray(z_refbf),
                               rtol=5e-2, atol=5e-2)
    assert zbf.shape == x.shape and zbf.dtype == x.dtype

    print("KERNEL_OK")
</pallas_src>

<mosaic_0001>
module attributes {stable_mosaic.version = 11 : i64} {
  func.func @_proj_pool_kernel(%arg0: i32, %arg1: i32, %arg2: memref<1x4x128x128xf32, #tpu.memory_space<vmem>>, %arg3: memref<128x128xf32, #tpu.memory_space<vmem>>, %arg4: memref<1x128xf32, #tpu.memory_space<vmem>>, %arg5: memref<128x128xf32, #tpu.memory_space<vmem>>, %arg6: memref<1x128xf32, #tpu.memory_space<vmem>>, %arg7: memref<1x128x128xf32, #tpu.memory_space<vmem>>, %arg8: memref<1x128x128xf32, #tpu.memory_space<vmem>>) attributes {dimension_semantics = [#tpu.dimension_semantics<parallel>, #tpu.dimension_semantics<parallel>], iteration_bounds = array<i64: 2, 1>, scalar_prefetch = 0 : i64, scratch_operands = 0 : i64, tpu.core_type = #tpu.core_type<tc>, window_params = [{transform_indices = @transform_0, window_bounds = array<i64: 1, 4, 128, 128>}, {pipeline_mode = #tpu.pipeline_mode<synchronous>, transform_indices = @transform_1, window_bounds = array<i64: 128, 128>}, {pipeline_mode = #tpu.pipeline_mode<synchronous>, transform_indices = @transform_2, window_bounds = array<i64: 1, 128>}, {pipeline_mode = #tpu.pipeline_mode<synchronous>, transform_indices = @transform_3, window_bounds = array<i64: 128, 128>}, {pipeline_mode = #tpu.pipeline_mode<synchronous>, transform_indices = @transform_4, window_bounds = array<i64: 1, 128>}, {transform_indices = @transform_5, window_bounds = array<i64: 1, 128, 128>}, {transform_indices = @transform_6, window_bounds = array<i64: 1, 128, 128>}]} {
    %c0 = arith.constant 0 : index
    %c0_0 = arith.constant 0 : index
    %c0_1 = arith.constant 0 : index
    %c0_2 = arith.constant 0 : index
    %0 = vector.load %arg2[%c0, %c0_0, %c0_1, %c0_2] : memref<1x4x128x128xf32, #tpu.memory_space<vmem>>, vector<1x4x128x128xf32>
    %1 = vector.shape_cast %0 : vector<1x4x128x128xf32> to vector<4x128x128xf32>
    %c0_3 = arith.constant 0 : index
    %c0_4 = arith.constant 0 : index
    %2 = vector.load %arg3[%c0_3, %c0_4] : memref<128x128xf32, #tpu.memory_space<vmem>>, vector<128x128xf32>
    %c0_5 = arith.constant 0 : index
    %c0_6 = arith.constant 0 : index
    %3 = vector.load %arg4[%c0_5, %c0_6] : memref<1x128xf32, #tpu.memory_space<vmem>>, vector<1x128xf32>
    %4 = vector.extract_strided_slice %1 {offsets = [0, 0, 0], sizes = [1, 128, 128], strides = [1, 1, 1]} : vector<4x128x128xf32> to vector<1x128x128xf32>
    %5 = vector.shape_cast %4 : vector<1x128x128xf32> to vector<128x128xf32>
    %cst = arith.constant dense<0.000000e+00> : vector<128x128xf32>
    %6 = tpu.matmul %5, %2, %cst {dimension_numbers = #tpu.dot_dimension_numbers<[1], [0], [0], [1], [0, 0, 1, 1], [], []>} : vector<128x128xf32>, vector<128x128xf32>, vector<128x128xf32> -> vector<128x128xf32>
    %7 = vector.extract_strided_slice %1 {offsets = [1, 0, 0], sizes = [1, 128, 128], strides = [1, 1, 1]} : vector<4x128x128xf32> to vector<1x128x128xf32>
    %8 = vector.shape_cast %7 : vector<1x128x128xf32> to vector<128x128xf32>
    %cst_7 = arith.constant dense<0.000000e+00> : vector<128x128xf32>
    %9 = tpu.matmul %8, %2, %cst_7 {dimension_numbers = #tpu.dot_dimension_numbers<[1], [0], [0], [1], [0, 0, 1, 1], [], []>} : vector<128x128xf32>, vector<128x128xf32>, vector<128x128xf32> -> vector<128x128xf32>
    %10 = arith.maximumf %6, %9 : vector<128x128xf32>
    %11 = vector.extract_strided_slice %1 {offsets = [2, 0, 0], sizes = [1, 128, 128], strides = [1, 1, 1]} : vector<4x128x128xf32> to vector<1x128x128xf32>
    %12 = vector.shape_cast %11 : vector<1x128x128xf32> to vector<128x128xf32>
    %cst_8 = arith.constant dense<0.000000e+00> : vector<128x128xf32>
    %13 = tpu.matmul %12, %2, %cst_8 {dimension_numbers = #tpu.dot_dimension_numbers<[1], [0], [0], [1], [0, 0, 1, 1], [], []>} : vector<128x128xf32>, vector<128x128xf32>, vector<128x128xf32> -> vector<128x128xf32>
    %14 = arith.maximumf %10, %13 : vector<128x128xf32>
    %15 = vector.extract_strided_slice %1 {offsets = [3, 0, 0], sizes = [1, 128, 128], strides = [1, 1, 1]} : vector<4x128x128xf32> to vector<1x128x128xf32>
    %16 = vector.shape_cast %15 : vector<1x128x128xf32> to vector<128x128xf32>
    %cst_9 = arith.constant dense<0.000000e+00> : vector<128x128xf32>
    %17 = tpu.matmul %16, %2, %cst_9 {dimension_numbers = #tpu.dot_dimension_numbers<[1], [0], [0], [1], [0, 0, 1, 1], [], []>} : vector<128x128xf32>, vector<128x128xf32>, vector<128x128xf32> -> vector<128x128xf32>
    %18 = arith.maximumf %14, %17 : vector<128x128xf32>
    %19 = vector.broadcast %3 : vector<1x128xf32> to vector<128x128xf32>
    %20 = arith.addf %18, %19 : vector<128x128xf32>
    %21 = tpu.transpose %20, [1, 0] : vector<128x128xf32> -> vector<128x128xf32>
    %c0_10 = arith.constant 0 : index
    %c0_11 = arith.constant 0 : index
    %c0_12 = arith.constant 0 : index
    %22 = vector.load %arg7[%c0_10, %c0_11, %c0_12] : memref<1x128x128xf32, #tpu.memory_space<vmem>>, vector<1x128x128xf32>
    %23 = vector.shape_cast %22 : vector<1x128x128xf32> to vector<128x128xf32>
    %24 = vector.shape_cast %21 : vector<128x128xf32> to vector<1x128x128xf32>
    tpu.vector_store %arg7[%c0_10, %c0_11, %c0_12], %24 {strides = array<i32>} : memref<1x128x128xf32, #tpu.memory_space<vmem>>, vector<1x128x128xf32>,
    %c0_13 = arith.constant 0 : index
    %c0_14 = arith.constant 0 : index
    %25 = vector.load %arg5[%c0_13, %c0_14] : memref<128x128xf32, #tpu.memory_space<vmem>>, vector<128x128xf32>
    %c0_15 = arith.constant 0 : index
    %c0_16 = arith.constant 0 : index
    %26 = vector.load %arg6[%c0_15, %c0_16] : memref<1x128xf32, #tpu.memory_space<vmem>>, vector<1x128xf32>
    %27 = vector.extract_strided_slice %1 {offsets = [0, 0, 0], sizes = [1, 128, 128], strides = [1, 1, 1]} : vector<4x128x128xf32> to vector<1x128x128xf32>
    %28 = vector.shape_cast %27 : vector<1x128x128xf32> to vector<128x128xf32>
    %cst_17 = arith.constant dense<0.000000e+00> : vector<128x128xf32>
    %29 = tpu.matmul %28, %25, %cst_17 {dimension_numbers = #tpu.dot_dimension_numbers<[1], [0], [0], [1], [0, 0, 1, 1], [], []>} : vector<128x128xf32>, vector<128x128xf32>, vector<128x128xf32> -> vector<128x128xf32>
    %30 = vector.extract_strided_slice %1 {offsets = [1, 0, 0], sizes = [1, 128, 128], strides = [1, 1, 1]} : vector<4x128x128xf32> to vector<1x128x128xf32>
    %31 = vector.shape_cast %30 : vector<1x128x128xf32> to vector<128x128xf32>
    %cst_18 = arith.constant dense<0.000000e+00> : vector<128x128xf32>
    %32 = tpu.matmul %31, %25, %cst_18 {dimension_numbers = #tpu.dot_dimension_numbers<[1], [0], [0], [1], [0, 0, 1, 1], [], []>} : vector<128x128xf32>, vector<128x128xf32>, vector<128x128xf32> -> vector<128x128xf32>
    %33 = arith.maximumf %29, %32 : vector<128x128xf32>
    %34 = vector.extract_strided_slice %1 {offsets = [2, 0, 0], sizes = [1, 128, 128], strides = [1, 1, 1]} : vector<4x128x128xf32> to vector<1x128x128xf32>
    %35 = vector.shape_cast %34 : vector<1x128x128xf32> to vector<128x128xf32>
    %cst_19 = arith.constant dense<0.000000e+00> : vector<128x128xf32>
    %36 = tpu.matmul %35, %25, %cst_19 {dimension_numbers = #tpu.dot_dimension_numbers<[1], [0], [0], [1], [0, 0, 1, 1], [], []>} : vector<128x128xf32>, vector<128x128xf32>, vector<128x128xf32> -> vector<128x128xf32>
    %37 = arith.maximumf %33, %36 : vector<128x128xf32>
    %38 = vector.extract_strided_slice %1 {offsets = [3, 0, 0], sizes = [1, 128, 128], strides = [1, 1, 1]} : vector<4x128x128xf32> to vector<1x128x128xf32>
    %39 = vector.shape_cast %38 : vector<1x128x128xf32> to vector<128x128xf32>
    %cst_20 = arith.constant dense<0.000000e+00> : vector<128x128xf32>
    %40 = tpu.matmul %39, %25, %cst_20 {dimension_numbers = #tpu.dot_dimension_numbers<[1], [0], [0], [1], [0, 0, 1, 1], [], []>} : vector<128x128xf32>, vector<128x128xf32>, vector<128x128xf32> -> vector<128x128xf32>
    %41 = arith.maximumf %37, %40 : vector<128x128xf32>
    %42 = vector.broadcast %26 : vector<1x128xf32> to vector<128x128xf32>
    %43 = arith.addf %41, %42 : vector<128x128xf32>
    %c0_21 = arith.constant 0 : index
    %c0_22 = arith.constant 0 : index
    %c0_23 = arith.constant 0 : index
    %44 = vector.load %arg8[%c0_21, %c0_22, %c0_23] : memref<1x128x128xf32, #tpu.memory_space<vmem>>, vector<1x128x128xf32>
    %45 = vector.shape_cast %44 : vector<1x128x128xf32> to vector<128x128xf32>
    %46 = vector.shape_cast %43 : vector<128x128xf32> to vector<1x128x128xf32>
    tpu.vector_store %arg8[%c0_21, %c0_22, %c0_23], %46 {strides = array<i32>} : memref<1x128x128xf32, #tpu.memory_space<vmem>>, vector<1x128x128xf32>,
    return
  }
  func.func @transform_0(%arg0: i32, %arg1: i32) -> (i32, i32, i32, i32) {
    %c0_i32 = arith.constant 0 : i32
    %c0_i32_0 = arith.constant 0 : i32
    %c0_i32_1 = arith.constant 0 : i32
    return %arg0, %c0_i32, %arg1, %c0_i32_0 : i32, i32, i32, i32
  }
  func.func @transform_1(%arg0: i32, %arg1: i32) -> (i32, i32) {
    %c0_i32 = arith.constant 0 : i32
    %c0_i32_0 = arith.constant 0 : i32
    %c0_i32_1 = arith.constant 0 : i32
    return %c0_i32, %c0_i32_0 : i32, i32
  }
  func.func @transform_2(%arg0: i32, %arg1: i32) -> (i32, i32) {
    %c0_i32 = arith.constant 0 : i32
    %c0_i32_0 = arith.constant 0 : i32
    %c0_i32_1 = arith.constant 0 : i32
    return %c0_i32, %c0_i32_0 : i32, i32
  }
  func.func @transform_3(%arg0: i32, %arg1: i32) -> (i32, i32) {
    %c0_i32 = arith.constant 0 : i32
    %c0_i32_0 = arith.constant 0 : i32
    %c0_i32_1 = arith.constant 0 : i32
    return %c0_i32, %c0_i32_0 : i32, i32
  }
  func.func @transform_4(%arg0: i32, %arg1: i32) -> (i32, i32) {
    %c0_i32 = arith.constant 0 : i32
    %c0_i32_0 = arith.constant 0 : i32
    %c0_i32_1 = arith.constant 0 : i32
    return %c0_i32, %c0_i32_0 : i32, i32
  }
  func.func @transform_5(%arg0: i32, %arg1: i32) -> (i32, i32, i32) {
    %c0_i32 = arith.constant 0 : i32
    %c0_i32_0 = arith.constant 0 : i32
    return %arg0, %c0_i32, %arg1 : i32, i32, i32
  }
  func.func @transform_6(%arg0: i32, %arg1: i32) -> (i32, i32, i32) {
    %c0_i32 = arith.constant 0 : i32
    %c0_i32_0 = arith.constant 0 : i32
    return %arg0, %arg1, %c0_i32 : i32, i32, i32
  }
}

</mosaic_0001>

<llo_original>
// kernel: tpu_custom_call.1
$region0: #{tpu_custom_call.1}
  #allocation0 [shape = 'u32[]', space=smem, size = 0x4, offset = 0x4, fixed_abs, tag = 'smem constant byte address 0x4 - core index']
  #allocation1 [shape = 'u32[144,128]{1,0:T(1,128)}', space=vmem, size = 0x12000, scoped, tag = 'internal scratch']
  %s0 = inlined_call_operand.hbm [shape: f32[2,4,128,128], index: 0, kind: input, shape index: {}]
  %s1 = inlined_call_operand.hbm [shape: f32[128,128], index: 1, kind: input, shape index: {}]
  %s2 = inlined_call_operand.vmem [shape: f32[1,128], index: 2, kind: input, shape index: {}]
  %s3 = inlined_call_operand.hbm [shape: f32[128,128], index: 3, kind: input, shape index: {}]
  %s4 = inlined_call_operand.vmem [shape: f32[1,128], index: 4, kind: input, shape index: {}]
  %s5 = inlined_call_operand.hbm [shape: f32[2,128,128], index: 5, kind: output, shape index: {0}]
  %s6 = inlined_call_operand.hbm [shape: f32[2,128,128], index: 6, kind: output, shape index: {1}]
  %7 = xla_tuple %s5, %s6
  %s8 = sld [smem:[#allocation0]]
  $region73: #{tpu_custom_call.1} parent=0
    _
  %s10 = ssub.s32 1, %s8
  %s11 = scalar_select 0, %s10, %s8
  $region1: #{tpu_custom_call.1} parent=0
    #allocation2 [shape = 'u8[524288]{0}', space=vmem, size = 0x80000, scoped, tag = 'input window, operand 0']
    #allocation3 [shape = 's32[2]{0}', space=sflag, size = 0x8, scoped, tag = 'scoped memory for tpu_custom_call.1']
    #allocation4 [shape = 's32[2]{0}', space=sflag, size = 0x8, scoped, tag = 'scoped memory for tpu_custom_call.1']
    #allocation5 [shape = 'u8[65536]{0}', space=vmem, size = 0x10000, scoped, tag = 'input window, operand 1, single buffered']
    #allocation6 [shape = 's32[1]{0}', space=sflag, size = 0x4, scoped, tag = 'scoped memory for tpu_custom_call.1']
    #allocation7 [shape = 'u8[65536]{0}', space=vmem, size = 0x10000, scoped, tag = 'input window, operand 3, single buffered']
    #allocation8 [shape = 'u8[131072]{0}', space=vmem, size = 0x20000, scoped, tag = 'output window, operand 0']
    #allocation9 [shape = 'u8[131072]{0}', space=vmem, size = 0x20000, scoped, tag = 'output window, operand 1']
    #allocation10 [shape = 's32[2]{0}', space=sflag, size = 0x8, scoped, tag = 'scoped memory for tpu_custom_call.1']
    %12 = vsyncpa [#allocation3], 0
    %s13 = scalar_lea.sflag [#allocation3], 1
    %14 = vsyncpa %s13, 0
    %15 = vsyncpa [#allocation6], 0
    %16 = vsyncpa [#allocation4], 0
    %s17 = scalar_lea.sflag [#allocation4], 1
    %18 = vsyncpa %s17, 0
    %19 = vsyncpa [#allocation10], 0
    %s20 = scalar_lea.sflag [#allocation10], 1
    %21 = vsyncpa %s20, 0
    loop: start=0, step=1, limit=4
    $region2: #{tpu_custom_call.1} parent=1 // loop_pre_header
      _
    $region3: #{tpu_custom_call.1} parent=1 // loop_header
      %s23 = sphi 0, %s27
      %p24 = scmp.ge.s32.totalorder %s23, 4
      %s30 = sphi 0, %s42
      %s31 = sphi 0, %s38
      %s32 = sphi 0, %s30
      %s33 = sphi 0, %s31
      %s34 = sphi 0, %s32
      %s35 = sphi 0, %s33
      %s47 = sphi 0, %s49
      %s50 = sphi 0, %s47
      %s51 = sphi 0, %s50
      %s67 = sphi 0, %s51
      %s71 = sphi 0, %s71
      %s73 = sphi 0, %s71
      %s74 = sphi 0, %s73
      %s88 = sphi 0, %s74
      %s92 = sphi 0, %s92
      %s94 = sphi 0, %s92
      %s95 = sphi 0, %s94
      %s109 = sphi 0, %s95
      %s113 = sphi 0, %s113
      %s115 = sphi 0, %s113
      %s116 = sphi 0, %s115
      %s130 = sphi 0, %s116
      %s134 = sphi 0, %s134
      %s136 = sphi 0, %s134
      %s137 = sphi 0, %s136
      %s151 = sphi 0, %s137
      %s159 = sphi 0, %s161
      %s162 = sphi 0, %s159
      %s163 = sphi 0, %s162
      %s179 = sphi 0, %s163
      %s187 = sphi 0, %s189
      %s190 = sphi 0, %s187
      %s191 = sphi 0, %s190
      %s207 = sphi 0, %s191
    $region4: #{tpu_custom_call.1} parent=1 // loop_header_branch
      %26 = sbr.rel (%p24) target = $region8
    $region5: #{tpu_custom_call.1} parent=1 // loop_body
      %s28 = ssub.s32 %s23, 1
      %s29 = ssub.s32 %s23, 2
      %s36 = sadd.s32 1, %s31
      %p37 = scmp.ge.s32.totalorder %s36, 1
      %s38 = scalar_select %p37, 0, %s36
      %s39 = sadd.s32 1, %s30
      %s40 = scalar_select %p37, %s39, %s30
      %p41 = scmp.ge.s32.totalorder %s40, 2
      %s42 = scalar_select %p41, 0, %s40
      %s43 = ssub.s32 %s30, %s42
      %s44 = ssub.s32 %s31, %s38
      %s45 = sor.u32 %s43, %s44
      %p46 = scmp.eq.s32.totalorder %s45, 0
      %s48 = sadd.s32 %s47, 1
      %s49 = scalar_select %p46, %s47, %s48
      %p52 = pneg %p46
      %p53 = scmp.eq.s32.totalorder %s23, 1
      %p54 = por %p52, %p53
      %p55 = scmp.ne.s32.totalorder %s47, %s50
      %p56 = scmp.eq.s32.totalorder %s23, 0
      %p57 = por %p55, %p56
      %p58 = scmp.ne.s32.totalorder %s47, %s50
      %p59 = scmp.eq.s32.totalorder %s28, 1
      %p60 = por %p58, %p59
      %p61 = scmp.ne.s32.totalorder %s50, %s51
      %p62 = scmp.eq.s32.totalorder %s28, 0
      %p63 = por %p61, %p62
      %p64 = scmp.ne.s32.totalorder %s50, %s51
      %p65 = scmp.eq.s32.totalorder %s29, 1
      %p66 = por %p64, %p65
      %p68 = scmp.ne.s32.totalorder %s51, %s67
      %p69 = scmp.eq.s32.totalorder %s29, 0
      %p70 = por %p68, %p69
      %s72 = sadd.s32 %s71, 1
      %p75 = scmp.eq.s32.totalorder %s23, 1
      %p76 = scmp.ne.s32.totalorder %s71, %s73
      %p77 = scmp.eq.s32.totalorder %s23, 0
      %p78 = por %p76, %p77
      %p79 = scmp.ne.s32.totalorder %s71, %s73
      %p80 = scmp.eq.s32.totalorder %s28, 1
      %p81 = por %p79, %p80
      %p82 = scmp.ne.s32.totalorder %s73, %s74
      %p83 = scmp.eq.s32.totalorder %s28, 0
      %p84 = por %p82, %p83
      %p85 = scmp.ne.s32.totalorder %s73, %s74
      %p86 = scmp.eq.s32.totalorder %s29, 1
      %p87 = por %p85, %p86
      %p89 = scmp.ne.s32.totalorder %s74, %s88
      %p90 = scmp.eq.s32.totalorder %s29, 0
      %p91 = por %p89, %p90
      %s93 = sadd.s32 %s92, 1
      %p96 = scmp.eq.s32.totalorder %s23, 1
      %p97 = scmp.ne.s32.totalorder %s92, %s94
      %p98 = scmp.eq.s32.totalorder %s23, 0
      %p99 = por %p97, %p98
      %p100 = scmp.ne.s32.totalorder %s92, %s94
      %p101 = scmp.eq.s32.totalorder %s28, 1
      %p102 = por %p100, %p101
      %p103 = scmp.ne.s32.totalorder %s94, %s95
      %p104 = scmp.eq.s32.totalorder %s28, 0
      %p105 = por %p103, %p104
      %p106 = scmp.ne.s32.totalorder %s94, %s95
      %p107 = scmp.eq.s32.totalorder %s29, 1
      %p108 = por %p106, %p107
      %p110 = scmp.ne.s32.totalorder %s95, %s109
      %p111 = scmp.eq.s32.totalorder %s29, 0
      %p112 = por %p110, %p111
      %s114 = sadd.s32 %s113, 1
      %p117 = scmp.eq.s32.totalorder %s23, 1
      %p118 = scmp.ne.s32.totalorder %s113, %s115
      %p119 = scmp.eq.s32.totalorder %s23, 0
      %p120 = por %p118, %p119
      %p121 = scmp.ne.s32.totalorder %s113, %s115
      %p122 = scmp.eq.s32.totalorder %s28, 1
      %p123 = por %p121, %p122
      %p124 = scmp.ne.s32.totalorder %s115, %s116
      %p125 = scmp.eq.s32.totalorder %s28, 0
      %p126 = por %p124, %p125
      %p127 = scmp.ne.s32.totalorder %s115, %s116
      %p128 = scmp.eq.s32.totalorder %s29, 1
      %p129 = por %p127, %p128
      %p131 = scmp.ne.s32.totalorder %s116, %s130
      %p132 = scmp.eq.s32.totalorder %s29, 0
      %p133 = por %p131, %p132
      %s135 = sadd.s32 %s134, 1
      %p138 = scmp.eq.s32.totalorder %s23, 1
      %p139 = scmp.ne.s32.totalorder %s134, %s136
      %p140 = scmp.eq.s32.totalorder %s23, 0
      %p141 = por %p139, %p140
      %p142 = scmp.ne.s32.totalorder %s134, %s136
      %p143 = scmp.eq.s32.totalorder %s28, 1
      %p144 = por %p142, %p143
      %p145 = scmp.ne.s32.totalorder %s136, %s137
      %p146 = scmp.eq.s32.totalorder %s28, 0
      %p147 = por %p145, %p146
      %p148 = scmp.ne.s32.totalorder %s136, %s137
      %p149 = scmp.eq.s32.totalorder %s29, 1
      %p150 = por %p148, %p149
      %p152 = scmp.ne.s32.totalorder %s137, %s151
      %p153 = scmp.eq.s32.totalorder %s29, 0
      %p154 = por %p152, %p153
      %s155 = ssub.s32 %s30, %s42
      %s156 = ssub.s32 %s31, %s38
      %s157 = sor.u32 %s155, %s156
      %p158 = scmp.eq.s32.totalorder %s157, 0
      %s160 = sadd.s32 %s159, 1
      %s161 = scalar_select %p158, %s159, %s160
      %p164 = pneg %p158
      %p165 = scmp.eq.s32.totalorder %s23, 1
      %p166 = por %p164, %p165
      %p167 = scmp.ne.s32.totalorder %s159, %s162
      %p168 = scmp.eq.s32.totalorder %s23, 0
      %p169 = por %p167, %p168
      %p170 = scmp.ne.s32.totalorder %s159, %s162
      %p171 = scmp.eq.s32.totalorder %s28, 1
      %p172 = por %p170, %p171
      %p173 = scmp.ne.s32.totalorder %s162, %s163
      %p174 = scmp.eq.s32.totalorder %s28, 0
      %p175 = por %p173, %p174
      %p176 = scmp.ne.s32.totalorder %s162, %s163
      %p177 = scmp.eq.s32.totalorder %s29, 1
      %p178 = por %p176, %p177
      %p180 = scmp.ne.s32.totalorder %s163, %s179
      %p181 = scmp.eq.s32.totalorder %s29, 0
      %p182 = por %p180, %p181
      %s183 = ssub.s32 %s30, %s42
      %s184 = ssub.s32 %s31, %s38
      %s185 = sor.u32 %s183, %s184
      %p186 = scmp.eq.s32.totalorder %s185, 0
      %s188 = sadd.s32 %s187, 1
      %s189 = scalar_select %p186, %s187, %s188
      %p192 = pneg %p186
      %p193 = scmp.eq.s32.totalorder %s23, 1
      %p194 = por %p192, %p193
      %p195 = scmp.ne.s32.totalorder %s187, %s190
      %p196 = scmp.eq.s32.totalorder %s23, 0
      %p197 = por %p195, %p196
      %p198 = scmp.ne.s32.totalorder %s187, %s190
      %p199 = scmp.eq.s32.totalorder %s28, 1
      %p200 = por %p198, %p199
      %p201 = scmp.ne.s32.totalorder %s190, %s191
      %p202 = scmp.eq.s32.totalorder %s28, 0
      %p203 = por %p201, %p202
      %p204 = scmp.ne.s32.totalorder %s190, %s191
      %p205 = scmp.eq.s32.totalorder %s29, 1
      %p206 = por %p204, %p205
      %p208 = scmp.ne.s32.totalorder %s191, %s207
      %p209 = scmp.eq.s32.totalorder %s29, 0
      %p210 = por %p208, %p209
      %p211 = scmp.le.s32.totalorder 1, %s23
      %p212 = scmp.lt.s32.totalorder %s23, 3
      %p213 = pnand %p211, %p212
      %p214 = pneg %p213
      // Predicated region
      $region9: #{tpu_custom_call.1} parent=5 // pred_check
        _
      $region10: #{tpu_custom_call.1} parent=5 // pred_check_branch
        %216 = sbr.rel (%p213) target = $region12
      $region11: #{tpu_custom_call.1} parent=5 // pred_region
        %s217 = ssub.s32 %s23, 1
        // Predicated region
        $region13: #{tpu_custom_call.1} parent=11 // pred_check
          %p218 = pneg %p84
        $region14: #{tpu_custom_call.1} parent=11 // pred_check_branch
          %220 = sbr.rel (%p218) target = $region16
        $region15: #{tpu_custom_call.1} parent=11 // pred_region
          %s222 = ssub.s32 2048, 2048
          %223 = vsyncadd [#allocation6], %s222
          %s224 = sshll.u32 [#allocation5], 4
          %s225 = int_to_ptr.vmem [resolvable:$true] %s224
          %230 = dma.hbm_to_vmem [thread:$0]  %s1, 2048, %s225, [#allocation6], 128, 128, 8
        $region16: #{tpu_custom_call.1} parent=11 // pred_fallthru
          _
        // Predicated region
        $region17: #{tpu_custom_call.1} parent=11 // pred_check
          %p231 = pneg %p105
        $region18: #{tpu_custom_call.1} parent=11 // pred_check_branch
          %233 = sbr.rel (%p231) target = $region20
        $region19: #{tpu_custom_call.1} parent=11 // pred_region
          _
        $region20: #{tpu_custom_call.1} parent=11 // pred_fallthru
          _
        // Predicated region
        $region21: #{tpu_custom_call.1} parent=11 // pred_check
          %p234 = pneg %p126
        $region22: #{tpu_custom_call.1} parent=11 // pred_check_branch
          %236 = sbr.rel (%p234) target = $region24
        $region23: #{tpu_custom_call.1} parent=11 // pred_region
          %s238 = ssub.s32 2048, 2048
          %239 = vsyncadd [#allocation6], %s238
          %s240 = sshll.u32 [#allocation7], 4
          %s241 = int_to_ptr.vmem [resolvable:$true] %s240
          %246 = dma.hbm_to_vmem [thread:$0]  %s3, 2048, %s241, [#allocation6], 128, 128, 8
        $region24: #{tpu_custom_call.1} parent=11 // pred_fallthru
          _
        // Predicated region
        $region25: #{tpu_custom_call.1} parent=11 // pred_check
          %p247 = pneg %p147
        $region26: #{tpu_custom_call.1} parent=11 // pred_check_branch
          %249 = sbr.rel (%p247) target = $region28
        $region27: #{tpu_custom_call.1} parent=11 // pred_region
          _
        $region28: #{tpu_custom_call.1} parent=11 // pred_fallthru
          _
      $region12: #{tpu_custom_call.1} parent=5 // pred_fallthru
        _
      %p250 = scmp.lt.s32.totalorder %s23, 2
      // Predicated region
      $region29: #{tpu_custom_call.1} parent=5 // pred_check
        %p251 = pneg %p250
      $region30: #{tpu_custom_call.1} parent=5 // pred_check_branch
        %253 = sbr.rel (%p251) target = $region32
      $region31: #{tpu_custom_call.1} parent=5 // pred_region
        // Predicated region
        $region33: #{tpu_custom_call.1} parent=31 // pred_check
          %p254 = pneg %p57
        $region34: #{tpu_custom_call.1} parent=31 // pred_check_branch
          %256 = sbr.rel (%p254) target = $region36
        $region35: #{tpu_custom_call.1} parent=31 // pred_region
          %s257 = sand.u32 %s47, 1
          %s258 = scalar_lea.sflag [#allocation3], %s257
          %s259 = sand.u32 %s47, 1
          %s260 = smul.addr %s259, 512
          %s261 = scalar_lea.vmem [#allocation2], %s260
          %s262 = smul.u32 16, %s31
          %s264 = ssub.s32 8192, 8192
          %265 = vsyncadd %s258, %s264
          %s266 = smul.addr %s30, 64
          %s267 = sadd.s32 %s262, %s266
          %s268 = smul.addr %s267, 128
          %s269 = scalar_lea.hbm %s0, %s268
          %s270 = sshll.u32 %s261, 4
          %s271 = int_to_ptr.vmem [resolvable:$true] %s270
          %276 = dma.hbm_to_vmem [thread:$0]  %s269, 8192, %s271, %s258, 128, 128, 8
        $region36: #{tpu_custom_call.1} parent=31 // pred_fallthru
          _
      $region32: #{tpu_custom_call.1} parent=5 // pred_fallthru
        _
      %p277 = scmp.le.s32.totalorder 1, %s23
      %p278 = scmp.lt.s32.totalorder %s23, 3
      %p279 = pnand %p277, %p278
      %p280 = pneg %p279
      // Predicated region
      $region37: #{tpu_custom_call.1} parent=5 // pred_check
        _
      $region38: #{tpu_custom_call.1} parent=5 // pred_check_branch
        %282 = sbr.rel (%p279) target = $region40
      $region39: #{tpu_custom_call.1} parent=5 // pred_region
        %s283 = ssub.s32 %s23, 1
        %s284 = sand.u32 %s50, 1
        %s285 = scalar_lea.sflag [#allocation3], %s284
        %s286 = sand.u32 %s50, 1
        %s287 = smul.addr %s286, 512
        %s288 = scalar_lea.vmem [#allocation2], %s287
        // Predicated region
        $region41: #{tpu_custom_call.1} parent=39 // pred_check
          %p289 = pneg %p63
        $region42: #{tpu_custom_call.1} parent=39 // pred_check_branch
          %291 = sbr.rel (%p289) target = $region44
        $region43: #{tpu_custom_call.1} parent=39 // pred_region
          %292 = dma.done %s285, 8192
        $region44: #{tpu_custom_call.1} parent=39 // pred_fallthru
          _
        // Predicated region
        $region45: #{tpu_custom_call.1} parent=39 // pred_check
          %p293 = pneg %p84
        $region46: #{tpu_custom_call.1} parent=39 // pred_check_branch
          %295 = sbr.rel (%p293) target = $region48
        $region47: #{tpu_custom_call.1} parent=39 // pred_region
          %296 = dma.done [#allocation6], 2048
        $region48: #{tpu_custom_call.1} parent=39 // pred_fallthru
          _
        // Predicated region
        $region49: #{tpu_custom_call.1} parent=39 // pred_check
          %p297 = pneg %p126
        $region50: #{tpu_custom_call.1} parent=39 // pred_check_branch
          %299 = sbr.rel (%p297) target = $region52
        $region51: #{tpu_custom_call.1} parent=39 // pred_region
          %300 = dma.done [#allocation6], 2048
        $region52: #{tpu_custom_call.1} parent=39 // pred_fallthru
          _
        %s301 = sand.u32 %s50, 1
        %s302 = scalar_lea.sflag [#allocation3], %s301
        %s303 = sand.u32 %s50, 1
        %s304 = smul.addr %s303, 512
        %s305 = scalar_lea.vmem [#allocation2], %s304
        %p306 = pneg %p63
        %p307 = pneg %p60
        %p308 = pneg %p84
        %p309 = pneg %p81
        %p310 = pneg %p105
        %p311 = pneg %p102
        %p312 = pneg %p126
        %p313 = pneg %p123
        %p314 = pneg %p147
        %p315 = pneg %p144
        %p316 = pneg %p175
        %p317 = pneg %p172
        %s318 = sand.u32 %s162, 1
        %s319 = scalar_lea.sflag [#allocation4], %s318
        %s320 = sand.u32 %s162, 1
        %s321 = smul.addr %s320, 128
        %s322 = scalar_lea.vmem [#allocation8], %s321
        %p323 = pneg %p203
        %p324 = pneg %p200
        %s325 = sand.u32 %s190, 1
        %s326 = scalar_lea.sflag [#allocation10], %s325
        %s327 = sand.u32 %s190, 1
        %s328 = smul.addr %s327, 128
        %s329 = scalar_lea.vmem [#allocation9], %s328
        %s330 = smul.u32 16, %s33
        %s331 = smul.u32 16, %s33
        %v332 = vld [vmem:[%s288] sm:$0xff]
        %v333 = vld [vmem:[%s288 + $0x8] sm:$0xff]
        %v334 = vld [vmem:[%s288 + $0x10] sm:$0xff]
        %v335 = vld [vmem:[%s288 + $0x18] sm:$0xff]
        %v336 = vld [vmem:[%s288 + $0x20] sm:$0xff]
        %v337 = vld [vmem:[%s288 + $0x28] sm:$0xff]
        %v338 = vld [vmem:[%s288 + $0x30] sm:$0xff]
        %v339 = vld [vmem:[%s288 + $0x38] sm:$0xff]
        %v340 = vld [vmem:[%s288 + $0x40] sm:$0xff]
        %v341 = vld [vmem:[%s288 + $0x48] sm:$0xff]
        %v342 = vld [vmem:[%s288 + $0x50] sm:$0xff]
        %v343 = vld [vmem:[%s288 + $0x58] sm:$0xff]
        %v344 = vld [vmem:[%s288 + $0x60] sm:$0xff]
        %v345 = vld [vmem:[%s288 + $0x68] sm:$0xff]
        %v346 = vld [vmem:[%s288 + $0x70] sm:$0xff]
        %v347 = vld [vmem:[%s288 + $0x78] sm:$0xff]
        %v348 = vld [vmem:[%s288 + $0x80] sm:$0xff]
        %v349 = vld [vmem:[%s288 + $0x88] sm:$0xff]
        %v350 = vld [vmem:[%s288 + $0x90] sm:$0xff]
        %v351 = vld [vmem:[%s288 + $0x98] sm:$0xff]
        %v352 = vld [vmem:[%s288 + $0xa0] sm:$0xff]
        %v353 = vld [vmem:[%s288 + $0xa8] sm:$0xff]
        %v354 = vld [vmem:[%s288 + $0xb0] sm:$0xff]
        %v355 = vld [vmem:[%s288 + $0xb8] sm:$0xff]
        %v356 = vld [vmem:[%s288 + $0xc0] sm:$0xff]
        %v357 = vld [vmem:[%s288 + $0xc8] sm:$0xff]
        %v358 = vld [vmem:[%s288 + $0xd0] sm:$0xff]
        %v359 = vld [vmem:[%s288 + $0xd8] sm:$0xff]
        %v360 = vld [vmem:[%s288 + $0xe0] sm:$0xff]
        %v361 = vld [vmem:[%s288 + $0xe8] sm:$0xff]
        %v362 = vld [vmem:[%s288 + $0xf0] sm:$0xff]
        %v363 = vld [vmem:[%s288 + $0xf8] sm:$0xff]
        %v364 = vld [vmem:[%s288 + $0x100] sm:$0xff]
        %v365 = vld [vmem:[%s288 + $0x108] sm:$0xff]
        %v366 = vld [vmem:[%s288 + $0x110] sm:$0xff]
        %v367 = vld [vmem:[%s288 + $0x118] sm:$0xff]
        %v368 = vld [vmem:[%s288 + $0x120] sm:$0xff]
        %v369 = vld [vmem:[%s288 + $0x128] sm:$0xff]
        %v370 = vld [vmem:[%s288 + $0x130] sm:$0xff]
        %v371 = vld [vmem:[%s288 + $0x138] sm:$0xff]
        %v372 = vld [vmem:[%s288 + $0x140] sm:$0xff]
        %v373 = vld [vmem:[%s288 + $0x148] sm:$0xff]
        %v374 = vld [vmem:[%s288 + $0x150] sm:$0xff]
        %v375 = vld [vmem:[%s288 + $0x158] sm:$0xff]
        %v376 = vld [vmem:[%s288 + $0x160] sm:$0xff]
        %v377 = vld [vmem:[%s288 + $0x168] sm:$0xff]
        %v378 = vld [vmem:[%s288 + $0x170] sm:$0xff]
        %v379 = vld [vmem:[%s288 + $0x178] sm:$0xff]
        %v380 = vld [vmem:[%s288 + $0x180] sm:$0xff]
        %v381 = vld [vmem:[%s288 + $0x188] sm:$0xff]
        %v382 = vld [vmem:[%s288 + $0x190] sm:$0xff]
        %v383 = vld [vmem:[%s288 + $0x198] sm:$0xff]
        %v384 = vld [vmem:[%s288 + $0x1a0] sm:$0xff]
        %v385 = vld [vmem:[%s288 + $0x1a8] sm:$0xff]
        %v386 = vld [vmem:[%s288 + $0x1b0] sm:$0xff]
        %v387 = vld [vmem:[%s288 + $0x1b8] sm:$0xff]
        %v388 = vld [vmem:[%s288 + $0x1c0] sm:$0xff]
        %v389 = vld [vmem:[%s288 + $0x1c8] sm:$0xff]
        %v390 = vld [vmem:[%s288 + $0x1d0] sm:$0xff]
        %v391 = vld [vmem:[%s288 + $0x1d8] sm:$0xff]
        %v392 = vld [vmem:[%s288 + $0x1e0] sm:$0xff]
        %v393 = vld [vmem:[%s288 + $0x1e8] sm:$0xff]
        %v394 = vld [vmem:[%s288 + $0x1f0] sm:$0xff]
        %v395 = vld [vmem:[%s288 + $0x1f8] sm:$0xff]
        %v396 = vld [vmem:[#allocation5] sm:$0xff]
        %v397 = vld [vmem:[#allocation5 + $0x8] sm:$0xff]
        %v398 = vld [vmem:[#allocation5 + $0x10] sm:$0xff]
        %v399 = vld [vmem:[#allocation5 + $0x18] sm:$0xff]
        %v400 = vld [vmem:[#allocation5 + $0x20] sm:$0xff]
        %v401 = vld [vmem:[#allocation5 + $0x28] sm:$0xff]
        %v402 = vld [vmem:[#allocation5 + $0x30] sm:$0xff]
        %v403 = vld [vmem:[#allocation5 + $0x38] sm:$0xff]
        %v404 = vld [vmem:[#allocation5 + $0x40] sm:$0xff]
        %v405 = vld [vmem:[#allocation5 + $0x48] sm:$0xff]
        %v406 = vld [vmem:[#allocation5 + $0x50] sm:$0xff]
        %v407 = vld [vmem:[#allocation5 + $0x58] sm:$0xff]
        %v408 = vld [vmem:[#allocation5 + $0x60] sm:$0xff]
        %v409 = vld [vmem:[#allocation5 + $0x68] sm:$0xff]
        %v410 = vld [vmem:[#allocation5 + $0x70] sm:$0xff]
        %v411 = vld [vmem:[#allocation5 + $0x78] sm:$0xff]
        %v412 = vld [vmem:[%s2] sm:$0x1]
        %413 = vmatprep.subr.mxu0 0.0
        %414 = vmatpush1.msra.mxu0 %v411
        %415 = vmatprep.subr.mxu0 0.0
        %416 = vmatpush1.msra.mxu0 %v410
        %417 = vmatprep.subr.mxu0 0.0
        %418 = vmatpush1.msra.mxu0 %v409
        %419 = vmatprep.subr.mxu0 0.0
        %420 = vmatpush1.msra.mxu0 %v408
        %421 = vmatprep.subr.mxu0 0.0
        %422 = vmatpush1.msra.mxu0 %v407
        %423 = vmatprep.subr.mxu0 0.0
        %424 = vmatpush1.msra.mxu0 %v406
        %425 = vmatprep.subr.mxu0 0.0
        %426 = vmatpush1.msra.mxu0 %v405
        %427 = vmatprep.subr.mxu0 0.0
        %428 = vmatpush1.msra.mxu0 %v404
        %429 = vmatprep.subr.mxu0 0.0
        %430 = vmatpush1.msra.mxu0 %v403
        %431 = vmatprep.subr.mxu0 0.0
        %432 = vmatpush1.msra.mxu0 %v402
        %433 = vmatprep.subr.mxu0 0.0
        %434 = vmatpush1.msra.mxu0 %v401
        %435 = vmatprep.subr.mxu0 0.0
        %436 = vmatpush1.msra.mxu0 %v400
        %437 = vmatprep.subr.mxu0 0.0
        %438 = vmatpush1.msra.mxu0 %v399
        %439 = vmatprep.subr.mxu0 0.0
        %440 = vmatpush1.msra.mxu0 %v398
        %441 = vmatprep.subr.mxu0 0.0
        %442 = vmatpush1.msra.mxu0 %v397
        %443 = vmatprep.subr.mxu0 0.0
        %444 = vmatpush1.msra.mxu0 %v396
        %445 = vmatprep.subr.mxu0 0.0
        %446 = vmatpush2.msra.mxu0 0.0
        %447 = vmatprep.subr.mxu0 0.0
        %448 = vmatpush2.msra.mxu0 0.0
        %449 = vmatprep.subr.mxu0 0.0
        %450 = vmatpush2.msra.mxu0 0.0
        %451 = vmatprep.subr.mxu0 0.0
        %452 = vmatpush2.msra.mxu0 0.0
        %453 = vmatprep.subr.mxu0 0.0
        %454 = vmatpush2.msra.mxu0 0.0
        %455 = vmatprep.subr.mxu0 0.0
        %456 = vmatpush2.msra.mxu0 0.0
        %457 = vmatprep.subr.mxu0 0.0
        %458 = vmatpush2.msra.mxu0 0.0
        %459 = vmatprep.subr.mxu0 0.0
        %460 = vmatpush2.msra.mxu0 0.0
        %461 = vmatprep.subr.mxu0 0.0
        %462 = vmatpush2.msra.mxu0 0.0
        %463 = vmatprep.subr.mxu0 0.0
        %464 = vmatpush2.msra.mxu0 0.0
        %465 = vmatprep.subr.mxu0 0.0
        %466 = vmatpush2.msra.mxu0 0.0
        %467 = vmatprep.subr.mxu0 0.0
        %468 = vmatpush2.msra.mxu0 0.0
        %469 = vmatprep.subr.mxu0 0.0
        %470 = vmatpush2.msra.mxu0 0.0
        %471 = vmatprep.subr.mxu0 0.0
        %472 = vmatpush2.msra.mxu0 0.0
        %473 = vmatprep.subr.mxu0 0.0
        %474 = vmatpush2.msra.mxu0 0.0
        %475 = vmatprep.subr.mxu0 0.0
        %476 = vmatpush2.msra.mxu0 0.0
        %477 = vmatprep.mubr.f32.mxu0 0.0
        %478 = vmatmul.mubr.f32.gmra.mxu0 %v332
        %v479 = vpop.f32.mrf.mxu0
        %v480 = vadd.f32 0.0, %v479
        %v481 = vpop.f32.mrf.mxu0
        %482 = vmatprep.mubr.f32.mxu0 0.0
        %483 = vmatmul.mubr.f32.gmra.mxu0 %v333
        %v484 = vpop.f32.mrf.mxu0
        %v485 = vadd.f32 0.0, %v484
        %v486 = vpop.f32.mrf.mxu0
        %487 = vmatprep.mubr.f32.mxu0 0.0
        %488 = vmatmul.mubr.f32.gmra.mxu0 %v334
        %v489 = vpop.f32.mrf.mxu0
        %v490 = vadd.f32 0.0, %v489
        %v491 = vpop.f32.mrf.mxu0
        %492 = vmatprep.mubr.f32.mxu0 0.0
        %493 = vmatmul.mubr.f32.gmra.mxu0 %v335
        %v494 = vpop.f32.mrf.mxu0
        %v495 = vadd.f32 0.0, %v494
        %v496 = vpop.f32.mrf.mxu0
        %497 = vmatprep.mubr.f32.mxu0 0.0
        %498 = vmatmul.mubr.f32.gmra.mxu0 %v336
        %v499 = vpop.f32.mrf.mxu0
        %v500 = vadd.f32 0.0, %v499
        %v501 = vpop.f32.mrf.mxu0
        %502 = vmatprep.mubr.f32.mxu0 0.0
        %503 = vmatmul.mubr.f32.gmra.mxu0 %v337
        %v504 = vpop.f32.mrf.mxu0
        %v505 = vadd.f32 0.0, %v504
        %v506 = vpop.f32.mrf.mxu0
        %507 = vmatprep.mubr.f32.mxu0 0.0
        %508 = vmatmul.mubr.f32.gmra.mxu0 %v338
        %v509 = vpop.f32.mrf.mxu0
        %v510 = vadd.f32 0.0, %v509
        %v511 = vpop.f32.mrf.mxu0
        %512 = vmatprep.mubr.f32.mxu0 0.0
        %513 = vmatmul.mubr.f32.gmra.mxu0 %v339
        %v514 = vpop.f32.mrf.mxu0
        %v515 = vadd.f32 0.0, %v514
        %v516 = vpop.f32.mrf.mxu0
        %517 = vmatprep.mubr.f32.mxu0 0.0
        %518 = vmatmul.mubr.f32.gmra.mxu0 %v340
        %v519 = vpop.f32.mrf.mxu0
        %v520 = vadd.f32 0.0, %v519
        %v521 = vpop.f32.mrf.mxu0
        %522 = vmatprep.mubr.f32.mxu0 0.0
        %523 = vmatmul.mubr.f32.gmra.mxu0 %v341
        %v524 = vpop.f32.mrf.mxu0
        %v525 = vadd.f32 0.0, %v524
        %v526 = vpop.f32.mrf.mxu0
        %527 = vmatprep.mubr.f32.mxu0 0.0
        %528 = vmatmul.mubr.f32.gmra.mxu0 %v342
        %v529 = vpop.f32.mrf.mxu0
        %v530 = vadd.f32 0.0, %v529
        %v531 = vpop.f32.mrf.mxu0
        %532 = vmatprep.mubr.f32.mxu0 0.0
        %533 = vmatmul.mubr.f32.gmra.mxu0 %v343
        %v534 = vpop.f32.mrf.mxu0
        %v535 = vadd.f32 0.0, %v534
        %v536 = vpop.f32.mrf.mxu0
        %537 = vmatprep.mubr.f32.mxu0 0.0
        %538 = vmatmul.mubr.f32.gmra.mxu0 %v344
        %v539 = vpop.f32.mrf.mxu0
        %v540 = vadd.f32 0.0, %v539
        %v541 = vpop.f32.mrf.mxu0
        %542 = vmatprep.mubr.f32.mxu0 0.0
        %543 = vmatmul.mubr.f32.gmra.mxu0 %v345
        %v544 = vpop.f32.mrf.mxu0
        %v545 = vadd.f32 0.0, %v544
        %v546 = vpop.f32.mrf.mxu0
        %547 = vmatprep.mubr.f32.mxu0 0.0
        %548 = vmatmul.mubr.f32.gmra.mxu0 %v346
        %v549 = vpop.f32.mrf.mxu0
        %v550 = vadd.f32 0.0, %v549
        %v551 = vpop.f32.mrf.mxu0
        %552 = vmatprep.mubr.f32.mxu0 0.0
        %553 = vmatmul.mubr.f32.gmra.mxu0 %v347
        %v554 = vpop.f32.mrf.mxu0
        %v555 = vadd.f32 0.0, %v554
        %v556 = vpop.f32.mrf.mxu0
        %557 = vdwg.mxu0
        %558 = vmatprep.subr.mxu0 0.0
        %559 = vmatpush1.msra.mxu0 %v411
        %560 = vmatprep.subr.mxu0 0.0
        %561 = vmatpush1.msra.mxu0 %v410
        %562 = vmatprep.subr.mxu0 0.0
        %563 = vmatpush1.msra.mxu0 %v409
        %564 = vmatprep.subr.mxu0 0.0
        %565 = vmatpush1.msra.mxu0 %v408
        %566 = vmatprep.subr.mxu0 0.0
        %567 = vmatpush1.msra.mxu0 %v407
        %568 = vmatprep.subr.mxu0 0.0
        %569 = vmatpush1.msra.mxu0 %v406
        %570 = vmatprep.subr.mxu0 0.0
        %571 = vmatpush1.msra.mxu0 %v405
        %572 = vmatprep.subr.mxu0 0.0
        %573 = vmatpush1.msra.mxu0 %v404
        %574 = vmatprep.subr.mxu0 0.0
        %575 = vmatpush1.msra.mxu0 %v403
        %576 = vmatprep.subr.mxu0 0.0
        %577 = vmatpush1.msra.mxu0 %v402
        %578 = vmatprep.subr.mxu0 0.0
        %579 = vmatpush1.msra.mxu0 %v401
        %580 = vmatprep.subr.mxu0 0.0
        %581 = vmatpush1.msra.mxu0 %v400
        %582 = vmatprep.subr.mxu0 0.0
        %583 = vmatpush1.msra.mxu0 %v399
        %584 = vmatprep.subr.mxu0 0.0
        %585 = vmatpush1.msra.mxu0 %v398
        %586 = vmatprep.subr.mxu0 0.0
        %587 = vmatpush1.msra.mxu0 %v397
        %588 = vmatprep.subr.mxu0 0.0
        %589 = vmatpush1.msra.mxu0 %v396
        %590 = vmatprep.subr.mxu0 0.0
        %591 = vmatpush2.msra.mxu0 0.0
        %592 = vmatprep.subr.mxu0 0.0
        %593 = vmatpush2.msra.mxu0 0.0
        %594 = vmatprep.subr.mxu0 0.0
        %595 = vmatpush2.msra.mxu0 0.0
        %596 = vmatprep.subr.mxu0 0.0
        %597 = vmatpush2.msra.mxu0 0.0
        %598 = vmatprep.subr.mxu0 0.0
        %599 = vmatpush2.msra.mxu0 0.0
        %600 = vmatprep.subr.mxu0 0.0
        %601 = vmatpush2.msra.mxu0 0.0
        %602 = vmatprep.subr.mxu0 0.0
        %603 = vmatpush2.msra.mxu0 0.0
        %604 = vmatprep.subr.mxu0 0.0
        %605 = vmatpush2.msra.mxu0 0.0
        %606 = vmatprep.subr.mxu0 0.0
        %607 = vmatpush2.msra.mxu0 0.0
        %608 = vmatprep.subr.mxu0 0.0
        %609 = vmatpush2.msra.mxu0 0.0
        %610 = vmatprep.subr.mxu0 0.0
        %611 = vmatpush2.msra.mxu0 0.0
        %612 = vmatprep.subr.mxu0 0.0
        %613 = vmatpush2.msra.mxu0 0.0
        %614 = vmatprep.subr.mxu0 0.0
        %615 = vmatpush2.msra.mxu0 0.0
        %616 = vmatprep.subr.mxu0 0.0
        %617 = vmatpush2.msra.mxu0 0.0
        %618 = vmatprep.subr.mxu0 0.0
        %619 = vmatpush2.msra.mxu0 0.0
        %620 = vmatprep.subr.mxu0 0.0
        %621 = vmatpush2.msra.mxu0 0.0
        %622 = vmatprep.mubr.f32.mxu0 0.0
        %623 = vmatmul.mubr.f32.gmra.mxu0 %v348
        %v624 = vpop.f32.mrf.mxu0
        %v625 = vadd.f32 0.0, %v624
        %v626 = vpop.f32.mrf.mxu0
        %627 = vmatprep.mubr.f32.mxu0 0.0
        %628 = vmatmul.mubr.f32.gmra.mxu0 %v349
        %v629 = vpop.f32.mrf.mxu0
        %v630 = vadd.f32 0.0, %v629
        %v631 = vpop.f32.mrf.mxu0
        %632 = vmatprep.mubr.f32.mxu0 0.0
        %633 = vmatmul.mubr.f32.gmra.mxu0 %v350
        %v634 = vpop.f32.mrf.mxu0
        %v635 = vadd.f32 0.0, %v634
        %v636 = vpop.f32.mrf.mxu0
        %637 = vmatprep.mubr.f32.mxu0 0.0
        %638 = vmatmul.mubr.f32.gmra.mxu0 %v351
        %v639 = vpop.f32.mrf.mxu0
        %v640 = vadd.f32 0.0, %v639
        %v641 = vpop.f32.mrf.mxu0
        %642 = vmatprep.mubr.f32.mxu0 0.0
        %643 = vmatmul.mubr.f32.gmra.mxu0 %v352
        %v644 = vpop.f32.mrf.mxu0
        %v645 = vadd.f32 0.0, %v644
        %v646 = vpop.f32.mrf.mxu0
        %647 = vmatprep.mubr.f32.mxu0 0.0
        %648 = vmatmul.mubr.f32.gmra.mxu0 %v353
        %v649 = vpop.f32.mrf.mxu0
        %v650 = vadd.f32 0.0, %v649
        %v651 = vpop.f32.mrf.mxu0
        %652 = vmatprep.mubr.f32.mxu0 0.0
        %653 = vmatmul.mubr.f32.gmra.mxu0 %v354
        %v654 = vpop.f32.mrf.mxu0
        %v655 = vadd.f32 0.0, %v654
        %v656 = vpop.f32.mrf.mxu0
        %657 = vmatprep.mubr.f32.mxu0 0.0
        %658 = vmatmul.mubr.f32.gmra.mxu0 %v355
        %v659 = vpop.f32.mrf.mxu0
        %v660 = vadd.f32 0.0, %v659
        %v661 = vpop.f32.mrf.mxu0
        %662 = vmatprep.mubr.f32.mxu0 0.0
        %663 = vmatmul.mubr.f32.gmra.mxu0 %v356
        %v664 = vpop.f32.mrf.mxu0
        %v665 = vadd.f32 0.0, %v664
        %v666 = vpop.f32.mrf.mxu0
        %667 = vmatprep.mubr.f32.mxu0 0.0
        %668 = vmatmul.mubr.f32.gmra.mxu0 %v357
        %v669 = vpop.f32.mrf.mxu0
        %v670 = vadd.f32 0.0, %v669
        %v671 = vpop.f32.mrf.mxu0
        %672 = vmatprep.mubr.f32.mxu0 0.0
        %673 = vmatmul.mubr.f32.gmra.mxu0 %v358
        %v674 = vpop.f32.mrf.mxu0
        %v675 = vadd.f32 0.0, %v674
        %v676 = vpop.f32.mrf.mxu0
        %677 = vmatprep.mubr.f32.mxu0 0.0
        %678 = vmatmul.mubr.f32.gmra.mxu0 %v359
        %v679 = vpop.f32.mrf.mxu0
        %v680 = vadd.f32 0.0, %v679
        %v681 = vpop.f32.mrf.mxu0
        %682 = vmatprep.mubr.f32.mxu0 0.0
        %683 = vmatmul.mubr.f32.gmra.mxu0 %v360
        %v684 = vpop.f32.mrf.mxu0
        %v685 = vadd.f32 0.0, %v684
        %v686 = vpop.f32.mrf.mxu0
        %687 = vmatprep.mubr.f32.mxu0 0.0
        %688 = vmatmul.mubr.f32.gmra.mxu0 %v361
        %v689 = vpop.f32.mrf.mxu0
        %v690 = vadd.f32 0.0, %v689
        %v691 = vpop.f32.mrf.mxu0
        %692 = vmatprep.mubr.f32.mxu0 0.0
        %693 = vmatmul.mubr.f32.gmra.mxu0 %v362
        %v694 = vpop.f32.mrf.mxu0
        %v695 = vadd.f32 0.0, %v694
        %v696 = vpop.f32.mrf.mxu0
        %697 = vmatprep.mubr.f32.mxu0 0.0
        %698 = vmatmul.mubr.f32.gmra.mxu0 %v363
        %v699 = vpop.f32.mrf.mxu0
        %v700 = vadd.f32 0.0, %v699
        %v701 = vpop.f32.mrf.mxu0
        %702 = vdwg.mxu0
        %v703 = vmax.f32 %v480, %v625
        %v704 = vmax.f32 %v485, %v630
        %v705 = vmax.f32 %v490, %v635
        %v706 = vmax.f32 %v495, %v640
        %v707 = vmax.f32 %v500, %v645
        %v708 = vmax.f32 %v505, %v650
        %v709 = vmax.f32 %v510, %v655
        %v710 = vmax.f32 %v515, %v660
        %v711 = vmax.f32 %v520, %v665
        %v712 = vmax.f32 %v525, %v670
        %v713 = vmax.f32 %v530, %v675
        %v714 = vmax.f32 %v535, %v680
        %v715 = vmax.f32 %v540, %v685
        %v716 = vmax.f32 %v545, %v690
        %v717 = vmax.f32 %v550, %v695
        %v718 = vmax.f32 %v555, %v700
        %719 = vmatprep.subr.mxu0 0.0
        %720 = vmatpush1.msra.mxu0 %v411
        %721 = vmatprep.subr.mxu0 0.0
        %722 = vmatpush1.msra.mxu0 %v410
        %723 = vmatprep.subr.mxu0 0.0
        %724 = vmatpush1.msra.mxu0 %v409
        %725 = vmatprep.subr.mxu0 0.0
        %726 = vmatpush1.msra.mxu0 %v408
        %727 = vmatprep.subr.mxu0 0.0
        %728 = vmatpush1.msra.mxu0 %v407
        %729 = vmatprep.subr.mxu0 0.0
        %730 = vmatpush1.msra.mxu0 %v406
        %731 = vmatprep.subr.mxu0 0.0
        %732 = vmatpush1.msra.mxu0 %v405
        %733 = vmatprep.subr.mxu0 0.0
        %734 = vmatpush1.msra.mxu0 %v404
        %735 = vmatprep.subr.mxu0 0.0
        %736 = vmatpush1.msra.mxu0 %v403
        %737 = vmatprep.subr.mxu0 0.0
        %738 = vmatpush1.msra.mxu0 %v402
        %739 = vmatprep.subr.mxu0 0.0
        %740 = vmatpush1.msra.mxu0 %v401
        %741 = vmatprep.subr.mxu0 0.0
        %742 = vmatpush1.msra.mxu0 %v400
        %743 = vmatprep.subr.mxu0 0.0
        %744 = vmatpush1.msra.mxu0 %v399
        %745 = vmatprep.subr.mxu0 0.0
        %746 = vmatpush1.msra.mxu0 %v398
        %747 = vmatprep.subr.mxu0 0.0
        %748 = vmatpush1.msra.mxu0 %v397
        %749 = vmatprep.subr.mxu0 0.0
        %750 = vmatpush1.msra.mxu0 %v396
        %751 = vmatprep.subr.mxu0 0.0
        %752 = vmatpush2.msra.mxu0 0.0
        %753 = vmatprep.subr.mxu0 0.0
        %754 = vmatpush2.msra.mxu0 0.0
        %755 = vmatprep.subr.mxu0 0.0
        %756 = vmatpush2.msra.mxu0 0.0
        %757 = vmatprep.subr.mxu0 0.0
        %758 = vmatpush2.msra.mxu0 0.0
        %759 = vmatprep.subr.mxu0 0.0
        %760 = vmatpush2.msra.mxu0 0.0
        %761 = vmatprep.subr.mxu0 0.0
        %762 = vmatpush2.msra.mxu0 0.0
        %763 = vmatprep.subr.mxu0 0.0
        %764 = vmatpush2.msra.mxu0 0.0
        %765 = vmatprep.subr.mxu0 0.0
        %766 = vmatpush2.msra.mxu0 0.0
        %767 = vmatprep.subr.mxu0 0.0
        %768 = vmatpush2.msra.mxu0 0.0
        %769 = vmatprep.subr.mxu0 0.0
        %770 = vmatpush2.msra.mxu0 0.0
        %771 = vmatprep.subr.mxu0 0.0
        %772 = vmatpush2.msra.mxu0 0.0
        %773 = vmatprep.subr.mxu0 0.0
        %774 = vmatpush2.msra.mxu0 0.0
        %775 = vmatprep.subr.mxu0 0.0
        %776 = vmatpush2.msra.mxu0 0.0
        %777 = vmatprep.subr.mxu0 0.0
        %778 = vmatpush2.msra.mxu0 0.0
        %779 = vmatprep.subr.mxu0 0.0
        %780 = vmatpush2.msra.mxu0 0.0
        %781 = vmatprep.subr.mxu0 0.0
        %782 = vmatpush2.msra.mxu0 0.0
        %783 = vmatprep.mubr.f32.mxu0 0.0
        %784 = vmatmul.mubr.f32.gmra.mxu0 %v364
        %v785 = vpop.f32.mrf.mxu0
        %v786 = vadd.f32 0.0, %v785
        %v787 = vpop.f32.mrf.mxu0
        %788 = vmatprep.mubr.f32.mxu0 0.0
        %789 = vmatmul.mubr.f32.gmra.mxu0 %v365
        %v790 = vpop.f32.mrf.mxu0
        %v791 = vadd.f32 0.0, %v790
        %v792 = vpop.f32.mrf.mxu0
        %793 = vmatprep.mubr.f32.mxu0 0.0
        %794 = vmatmul.mubr.f32.gmra.mxu0 %v366
        %v795 = vpop.f32.mrf.mxu0
        %v796 = vadd.f32 0.0, %v795
        %v797 = vpop.f32.mrf.mxu0
        %798 = vmatprep.mubr.f32.mxu0 0.0
        %799 = vmatmul.mubr.f32.gmra.mxu0 %v367
        %v800 = vpop.f32.mrf.mxu0
        %v801 = vadd.f32 0.0, %v800
        %v802 = vpop.f32.mrf.mxu0
        %803 = vmatprep.mubr.f32.mxu0 0.0
        %804 = vmatmul.mubr.f32.gmra.mxu0 %v368
        %v805 = vpop.f32.mrf.mxu0
        %v806 = vadd.f32 0.0, %v805
        %v807 = vpop.f32.mrf.mxu0
        %808 = vmatprep.mubr.f32.mxu0 0.0
        %809 = vmatmul.mubr.f32.gmra.mxu0 %v369
        %v810 = vpop.f32.mrf.mxu0
        %v811 = vadd.f32 0.0, %v810
        %v812 = vpop.f32.mrf.mxu0
        %813 = vmatprep.mubr.f32.mxu0 0.0
        %814 = vmatmul.mubr.f32.gmra.mxu0 %v370
        %v815 = vpop.f32.mrf.mxu0
        %v816 = vadd.f32 0.0, %v815
        %v817 = vpop.f32.mrf.mxu0
        %818 = vmatprep.mubr.f32.mxu0 0.0
        %819 = vmatmul.mubr.f32.gmra.mxu0 %v371
        %v820 = vpop.f32.mrf.mxu0
        %v821 = vadd.f32 0.0, %v820
        %v822 = vpop.f32.mrf.mxu0
        %823 = vmatprep.mubr.f32.mxu0 0.0
        %824 = vmatmul.mubr.f32.gmra.mxu0 %v372
        %v825 = vpop.f32.mrf.mxu0
        %v826 = vadd.f32 0.0, %v825
        %v827 = vpop.f32.mrf.mxu0
        %828 = vmatprep.mubr.f32.mxu0 0.0
        %829 = vmatmul.mubr.f32.gmra.mxu0 %v373
        %v830 = vpop.f32.mrf.mxu0
        %v831 = vadd.f32 0.0, %v830
        %v832 = vpop.f32.mrf.mxu0
        %833 = vmatprep.mubr.f32.mxu0 0.0
        %834 = vmatmul.mubr.f32.gmra.mxu0 %v374
        %v835 = vpop.f32.mrf.mxu0
        %v836 = vadd.f32 0.0, %v835
        %v837 = vpop.f32.mrf.mxu0
        %838 = vmatprep.mubr.f32.mxu0 0.0
        %839 = vmatmul.mubr.f32.gmra.mxu0 %v375
        %v840 = vpop.f32.mrf.mxu0
        %v841 = vadd.f32 0.0, %v840
        %v842 = vpop.f32.mrf.mxu0
        %843 = vmatprep.mubr.f32.mxu0 0.0
        %844 = vmatmul.mubr.f32.gmra.mxu0 %v376
        %v845 = vpop.f32.mrf.mxu0
        %v846 = vadd.f32 0.0, %v845
        %v847 = vpop.f32.mrf.mxu0
        %848 = vmatprep.mubr.f32.mxu0 0.0
        %849 = vmatmul.mubr.f32.gmra.mxu0 %v377
        %v850 = vpop.f32.mrf.mxu0
        %v851 = vadd.f32 0.0, %v850
        %v852 = vpop.f32.mrf.mxu0
        %853 = vmatprep.mubr.f32.mxu0 0.0
        %854 = vmatmul.mubr.f32.gmra.mxu0 %v378
        %v855 = vpop.f32.mrf.mxu0
        %v856 = vadd.f32 0.0, %v855
        %v857 = vpop.f32.mrf.mxu0
        %858 = vmatprep.mubr.f32.mxu0 0.0
        %859 = vmatmul.mubr.f32.gmra.mxu0 %v379
        %v860 = vpop.f32.mrf.mxu0
        %v861 = vadd.f32 0.0, %v860
        %v862 = vpop.f32.mrf.mxu0
        %863 = vdwg.mxu0
        %v864 = vmax.f32 %v703, %v786
        %v865 = vmax.f32 %v704, %v791
        %v866 = vmax.f32 %v705, %v796
        %v867 = vmax.f32 %v706, %v801
        %v868 = vmax.f32 %v707, %v806
        %v869 = vmax.f32 %v708, %v811
        %v870 = vmax.f32 %v709, %v816
        %v871 = vmax.f32 %v710, %v821
        %v872 = vmax.f32 %v711, %v826
        %v873 = vmax.f32 %v712, %v831
        %v874 = vmax.f32 %v713, %v836
        %v875 = vmax.f32 %v714, %v841
        %v876 = vmax.f32 %v715, %v846
        %v877 = vmax.f32 %v716, %v851
        %v878 = vmax.f32 %v717, %v856
        %v879 = vmax.f32 %v718, %v861
        %880 = vmatprep.subr.mxu0 0.0
        %881 = vmatpush1.msra.mxu0 %v411
        %882 = vmatprep.subr.mxu0 0.0
        %883 = vmatpush1.msra.mxu0 %v410
        %884 = vmatprep.subr.mxu0 0.0
        %885 = vmatpush1.msra.mxu0 %v409
        %886 = vmatprep.subr.mxu0 0.0
        %887 = vmatpush1.msra.mxu0 %v408
        %888 = vmatprep.subr.mxu0 0.0
        %889 = vmatpush1.msra.mxu0 %v407
        %890 = vmatprep.subr.mxu0 0.0
        %891 = vmatpush1.msra.mxu0 %v406
        %892 = vmatprep.subr.mxu0 0.0
        %893 = vmatpush1.msra.mxu0 %v405
        %894 = vmatprep.subr.mxu0 0.0
        %895 = vmatpush1.msra.mxu0 %v404
        %896 = vmatprep.subr.mxu0 0.0
        %897 = vmatpush1.msra.mxu0 %v403
        %898 = vmatprep.subr.mxu0 0.0
        %899 = vmatpush1.msra.mxu0 %v402
        %900 = vmatprep.subr.mxu0 0.0
        %901 = vmatpush1.msra.mxu0 %v401
        %902 = vmatprep.subr.mxu0 0.0
        %903 = vmatpush1.msra.mxu0 %v400
        %904 = vmatprep.subr.mxu0 0.0
        %905 = vmatpush1.msra.mxu0 %v399
        %906 = vmatprep.subr.mxu0 0.0
        %907 = vmatpush1.msra.mxu0 %v398
        %908 = vmatprep.subr.mxu0 0.0
        %909 = vmatpush1.msra.mxu0 %v397
        %910 = vmatprep.subr.mxu0 0.0
        %911 = vmatpush1.msra.mxu0 %v396
        %912 = vmatprep.subr.mxu0 0.0
        %913 = vmatpush2.msra.mxu0 0.0
        %914 = vmatprep.subr.mxu0 0.0
        %915 = vmatpush2.msra.mxu0 0.0
        %916 = vmatprep.subr.mxu0 0.0
        %917 = vmatpush2.msra.mxu0 0.0
        %918 = vmatprep.subr.mxu0 0.0
        %919 = vmatpush2.msra.mxu0 0.0
        %920 = vmatprep.subr.mxu0 0.0
        %921 = vmatpush2.msra.mxu0 0.0
        %922 = vmatprep.subr.mxu0 0.0
        %923 = vmatpush2.msra.mxu0 0.0
        %924 = vmatprep.subr.mxu0 0.0
        %925 = vmatpush2.msra.mxu0 0.0
        %926 = vmatprep.subr.mxu0 0.0
        %927 = vmatpush2.msra.mxu0 0.0
        %928 = vmatprep.subr.mxu0 0.0
        %929 = vmatpush2.msra.mxu0 0.0
        %930 = vmatprep.subr.mxu0 0.0
        %931 = vmatpush2.msra.mxu0 0.0
        %932 = vmatprep.subr.mxu0 0.0
        %933 = vmatpush2.msra.mxu0 0.0
        %934 = vmatprep.subr.mxu0 0.0
        %935 = vmatpush2.msra.mxu0 0.0
        %936 = vmatprep.subr.mxu0 0.0
        %937 = vmatpush2.msra.mxu0 0.0
        %938 = vmatprep.subr.mxu0 0.0
        %939 = vmatpush2.msra.mxu0 0.0
        %940 = vmatprep.subr.mxu0 0.0
        %941 = vmatpush2.msra.mxu0 0.0
        %942 = vmatprep.subr.mxu0 0.0
        %943 = vmatpush2.msra.mxu0 0.0
        %944 = vmatprep.mubr.f32.mxu0 0.0
        %945 = vmatmul.mubr.f32.gmra.mxu0 %v380
        %v946 = vpop.f32.mrf.mxu0
        %v947 = vadd.f32 0.0, %v946
        %v948 = vpop.f32.mrf.mxu0
        %949 = vmatprep.mubr.f32.mxu0 0.0
        %950 = vmatmul.mubr.f32.gmra.mxu0 %v381
        %v951 = vpop.f32.mrf.mxu0
        %v952 = vadd.f32 0.0, %v951
        %v953 = vpop.f32.mrf.mxu0
        %954 = vmatprep.mubr.f32.mxu0 0.0
        %955 = vmatmul.mubr.f32.gmra.mxu0 %v382
        %v956 = vpop.f32.mrf.mxu0
        %v957 = vadd.f32 0.0, %v956
        %v958 = vpop.f32.mrf.mxu0
        %959 = vmatprep.mubr.f32.mxu0 0.0
        %960 = vmatmul.mubr.f32.gmra.mxu0 %v383
        %v961 = vpop.f32.mrf.mxu0
        %v962 = vadd.f32 0.0, %v961
        %v963 = vpop.f32.mrf.mxu0
        %964 = vmatprep.mubr.f32.mxu0 0.0
        %965 = vmatmul.mubr.f32.gmra.mxu0 %v384
        %v966 = vpop.f32.mrf.mxu0
        %v967 = vadd.f32 0.0, %v966
        %v968 = vpop.f32.mrf.mxu0
        %969 = vmatprep.mubr.f32.mxu0 0.0
        %970 = vmatmul.mubr.f32.gmra.mxu0 %v385
        %v971 = vpop.f32.mrf.mxu0
        %v972 = vadd.f32 0.0, %v971
        %v973 = vpop.f32.mrf.mxu0
        %974 = vmatprep.mubr.f32.mxu0 0.0
        %975 = vmatmul.mubr.f32.gmra.mxu0 %v386
        %v976 = vpop.f32.mrf.mxu0
        %v977 = vadd.f32 0.0, %v976
        %v978 = vpop.f32.mrf.mxu0
        %979 = vmatprep.mubr.f32.mxu0 0.0
        %980 = vmatmul.mubr.f32.gmra.mxu0 %v387
        %v981 = vpop.f32.mrf.mxu0
        %v982 = vadd.f32 0.0, %v981
        %v983 = vpop.f32.mrf.mxu0
        %984 = vmatprep.mubr.f32.mxu0 0.0
        %985 = vmatmul.mubr.f32.gmra.mxu0 %v388
        %v986 = vpop.f32.mrf.mxu0
        %v987 = vadd.f32 0.0, %v986
        %v988 = vpop.f32.mrf.mxu0
        %989 = vmatprep.mubr.f32.mxu0 0.0
        %990 = vmatmul.mubr.f32.gmra.mxu0 %v389
        %v991 = vpop.f32.mrf.mxu0
        %v992 = vadd.f32 0.0, %v991
        %v993 = vpop.f32.mrf.mxu0
        %994 = vmatprep.mubr.f32.mxu0 0.0
        %995 = vmatmul.mubr.f32.gmra.mxu0 %v390
        %v996 = vpop.f32.mrf.mxu0
        %v997 = vadd.f32 0.0, %v996
        %v998 = vpop.f32.mrf.mxu0
        %999 = vmatprep.mubr.f32.mxu0 0.0
        %1000 = vmatmul.mubr.f32.gmra.mxu0 %v391
        %v1001 = vpop.f32.mrf.mxu0
        %v1002 = vadd.f32 0.0, %v1001
        %v1003 = vpop.f32.mrf.mxu0
        %1004 = vmatprep.mubr.f32.mxu0 0.0
        %1005 = vmatmul.mubr.f32.gmra.mxu0 %v392
        %v1006 = vpop.f32.mrf.mxu0
        %v1007 = vadd.f32 0.0, %v1006
        %v1008 = vpop.f32.mrf.mxu0
        %1009 = vmatprep.mubr.f32.mxu0 0.0
        %1010 = vmatmul.mubr.f32.gmra.mxu0 %v393
        %v1011 = vpop.f32.mrf.mxu0
        %v1012 = vadd.f32 0.0, %v1011
        %v1013 = vpop.f32.mrf.mxu0
        %1014 = vmatprep.mubr.f32.mxu0 0.0
        %1015 = vmatmul.mubr.f32.gmra.mxu0 %v394
        %v1016 = vpop.f32.mrf.mxu0
        %v1017 = vadd.f32 0.0, %v1016
        %v1018 = vpop.f32.mrf.mxu0
        %1019 = vmatprep.mubr.f32.mxu0 0.0
        %1020 = vmatmul.mubr.f32.gmra.mxu0 %v395
        %v1021 = vpop.f32.mrf.mxu0
        %v1022 = vadd.f32 0.0, %v1021
        %v1023 = vpop.f32.mrf.mxu0
        %1024 = vdwg.mxu0
        %v1025 = vmax.f32 %v864, %v947
        %v1026 = vmax.f32 %v865, %v952
        %v1027 = vmax.f32 %v866, %v957
        %v1028 = vmax.f32 %v867, %v962
        %v1029 = vmax.f32 %v868, %v967
        %v1030 = vmax.f32 %v869, %v972
        %v1031 = vmax.f32 %v870, %v977
        %v1032 = vmax.f32 %v871, %v982
        %v1033 = vmax.f32 %v872, %v987
        %v1034 = vmax.f32 %v873, %v992
        %v1035 = vmax.f32 %v874, %v997
        %v1036 = vmax.f32 %v875, %v1002
        %v1037 = vmax.f32 %v876, %v1007
        %v1038 = vmax.f32 %v877, %v1012
        %v1039 = vmax.f32 %v878, %v1017
        %v1040 = vmax.f32 %v879, %v1022
        %v1042 = vlaneseq
        %v1043 = vshrl.u32 %v1042, 7
        %v1044 = vsub.s32 0, %v1043
        %v1045 = vrot.slane %v412, %v1044
        %v1047 = vadd.f32 %v1025, %v1045
        %v1048 = vadd.f32 %v1026, %v1045
        %v1049 = vadd.f32 %v1027, %v1045
        %v1050 = vadd.f32 %v1028, %v1045
        %v1051 = vadd.f32 %v1029, %v1045
        %v1052 = vadd.f32 %v1030, %v1045
        %v1053 = vadd.f32 %v1031, %v1045
        %v1054 = vadd.f32 %v1032, %v1045
        %v1055 = vadd.f32 %v1033, %v1045
        %v1056 = vadd.f32 %v1034, %v1045
        %v1057 = vadd.f32 %v1035, %v1045
        %v1058 = vadd.f32 %v1036, %v1045
        %v1059 = vadd.f32 %v1037, %v1045
        %v1060 = vadd.f32 %v1038, %v1045
        %v1061 = vadd.f32 %v1039, %v1045
        %v1062 = vadd.f32 %v1040, %v1045
        %1063 = vxpose.xlu0.b32.start [1/16] %v1047, 128
        %1064 = vxpose.xlu0.b32.cont [2/16] %v1048, 128
        %1065 = vxpose.xlu0.b32.cont [3/16] %v1049, 128
        %1066 = vxpose.xlu0.b32.cont [4/16] %v1050, 128
        %1067 = vxpose.xlu0.b32.cont [5/16] %v1051, 128
        %1068 = vxpose.xlu0.b32.cont [6/16] %v1052, 128
        %1069 = vxpose.xlu0.b32.cont [7/16] %v1053, 128
        %1070 = vxpose.xlu0.b32.cont [8/16] %v1054, 128
        %1071 = vxpose.xlu0.b32.cont [9/16] %v1055, 128
        %1072 = vxpose.xlu0.b32.cont [10/16] %v1056, 128
        %1073 = vxpose.xlu0.b32.cont [11/16] %v1057, 128
        %1074 = vxpose.xlu0.b32.cont [12/16] %v1058, 128
        %1075 = vxpose.xlu0.b32.cont [13/16] %v1059, 128
        %1076 = vxpose.xlu0.b32.cont [14/16] %v1060, 128
        %1077 = vxpose.xlu0.b32.cont [15/16] %v1061, 128
        %1078 = vxpose.xlu0.b32.end [16/16] %v1062, 128
        %v1079 = vpop.trf.xlu0
        %v1080 = vpop.trf.xlu0
        %v1081 = vpop.trf.xlu0
        %v1082 = vpop.trf.xlu0
        %v1083 = vpop.trf.xlu0
        %v1084 = vpop.trf.xlu0
        %v1085 = vpop.trf.xlu0
        %v1086 = vpop.trf.xlu0
        %v1087 = vpop.trf.xlu0
        %v1088 = vpop.trf.xlu0
        %v1089 = vpop.trf.xlu0
        %v1090 = vpop.trf.xlu0
        %v1091 = vpop.trf.xlu0
        %v1092 = vpop.trf.xlu0
        %v1093 = vpop.trf.xlu0
        %v1094 = vpop.trf.xlu0
        %1095 = vst [vmem:[%s322] sm:$0xff] %v1079
        %1096 = vst [vmem:[%s322 + $0x8] sm:$0xff] %v1080
        %1097 = vst [vmem:[%s322 + $0x10] sm:$0xff] %v1081
        %1098 = vst [vmem:[%s322 + $0x18] sm:$0xff] %v1082
        %1099 = vst [vmem:[%s322 + $0x20] sm:$0xff] %v1083
        %1100 = vst [vmem:[%s322 + $0x28] sm:$0xff] %v1084
        %1101 = vst [vmem:[%s322 + $0x30] sm:$0xff] %v1085
        %1102 = vst [vmem:[%s322 + $0x38] sm:$0xff] %v1086
        %1103 = vst [vmem:[%s322 + $0x40] sm:$0xff] %v1087
        %1104 = vst [vmem:[%s322 + $0x48] sm:$0xff] %v1088
        %1105 = vst [vmem:[%s322 + $0x50] sm:$0xff] %v1089
        %1106 = vst [vmem:[%s322 + $0x58] sm:$0xff] %v1090
        %1107 = vst [vmem:[%s322 + $0x60] sm:$0xff] %v1091
        %1108 = vst [vmem:[%s322 + $0x68] sm:$0xff] %v1092
        %1109 = vst [vmem:[%s322 + $0x70] sm:$0xff] %v1093
        %1110 = vst [vmem:[%s322 + $0x78] sm:$0xff] %v1094
        %v1111 = vld [vmem:[#allocation7] sm:$0xff]
        %v1112 = vld [vmem:[#allocation7 + $0x8] sm:$0xff]
        %v1113 = vld [vmem:[#allocation7 + $0x10] sm:$0xff]
        %v1114 = vld [vmem:[#allocation7 + $0x18] sm:$0xff]
        %v1115 = vld [vmem:[#allocation7 + $0x20] sm:$0xff]
        %v1116 = vld [vmem:[#allocation7 + $0x28] sm:$0xff]
        %v1117 = vld [vmem:[#allocation7 + $0x30] sm:$0xff]
        %v1118 = vld [vmem:[#allocation7 + $0x38] sm:$0xff]
        %v1119 = vld [vmem:[#allocation7 + $0x40] sm:$0xff]
        %v1120 = vld [vmem:[#allocation7 + $0x48] sm:$0xff]
        %v1121 = vld [vmem:[#allocation7 + $0x50] sm:$0xff]
        %v1122 = vld [vmem:[#allocation7 + $0x58] sm:$0xff]
        %v1123 = vld [vmem:[#allocation7 + $0x60] sm:$0xff]
        %v1124 = vld [vmem:[#allocation7 + $0x68] sm:$0xff]
        %v1125 = vld [vmem:[#allocation7 + $0x70] sm:$0xff]
        %v1126 = vld [vmem:[#allocation7 + $0x78] sm:$0xff]
        %v1127 = vld [vmem:[%s4] sm:$0x1]
        %1128 = vmatprep.subr.mxu0 0.0
        %1129 = vmatpush1.msra.mxu0 %v1126
        %1130 = vmatprep.subr.mxu0 0.0
        %1131 = vmatpush1.msra.mxu0 %v1125
        %1132 = vmatprep.subr.mxu0 0.0
        %1133 = vmatpush1.msra.mxu0 %v1124
        %1134 = vmatprep.subr.mxu0 0.0
        %1135 = vmatpush1.msra.mxu0 %v1123
        %1136 = vmatprep.subr.mxu0 0.0
        %1137 = vmatpush1.msra.mxu0 %v1122
        %1138 = vmatprep.subr.mxu0 0.0
        %1139 = vmatpush1.msra.mxu0 %v1121
        %1140 = vmatprep.subr.mxu0 0.0
        %1141 = vmatpush1.msra.mxu0 %v1120
        %1142 = vmatprep.subr.mxu0 0.0
        %1143 = vmatpush1.msra.mxu0 %v1119
        %1144 = vmatprep.subr.mxu0 0.0
        %1145 = vmatpush1.msra.mxu0 %v1118
        %1146 = vmatprep.subr.mxu0 0.0
        %1147 = vmatpush1.msra.mxu0 %v1117
        %1148 = vmatprep.subr.mxu0 0.0
        %1149 = vmatpush1.msra.mxu0 %v1116
        %1150 = vmatprep.subr.mxu0 0.0
        %1151 = vmatpush1.msra.mxu0 %v1115
        %1152 = vmatprep.subr.mxu0 0.0
        %1153 = vmatpush1.msra.mxu0 %v1114
        %1154 = vmatprep.subr.mxu0 0.0
        %1155 = vmatpush1.msra.mxu0 %v1113
        %1156 = vmatprep.subr.mxu0 0.0
        %1157 = vmatpush1.msra.mxu0 %v1112
        %1158 = vmatprep.subr.mxu0 0.0
        %1159 = vmatpush1.msra.mxu0 %v1111
        %1160 = vmatprep.subr.mxu0 0.0
        %1161 = vmatpush2.msra.mxu0 0.0
        %1162 = vmatprep.subr.mxu0 0.0
        %1163 = vmatpush2.msra.mxu0 0.0
        %1164 = vmatprep.subr.mxu0 0.0
        %1165 = vmatpush2.msra.mxu0 0.0
        %1166 = vmatprep.subr.mxu0 0.0
        %1167 = vmatpush2.msra.mxu0 0.0
        %1168 = vmatprep.subr.mxu0 0.0
        %1169 = vmatpush2.msra.mxu0 0.0
        %1170 = vmatprep.subr.mxu0 0.0
        %1171 = vmatpush2.msra.mxu0 0.0
        %1172 = vmatprep.subr.mxu0 0.0
        %1173 = vmatpush2.msra.mxu0 0.0
        %1174 = vmatprep.subr.mxu0 0.0
        %1175 = vmatpush2.msra.mxu0 0.0
        %1176 = vmatprep.subr.mxu0 0.0
        %1177 = vmatpush2.msra.mxu0 0.0
        %1178 = vmatprep.subr.mxu0 0.0
        %1179 = vmatpush2.msra.mxu0 0.0
        %1180 = vmatprep.subr.mxu0 0.0
        %1181 = vmatpush2.msra.mxu0 0.0
        %1182 = vmatprep.subr.mxu0 0.0
        %1183 = vmatpush2.msra.mxu0 0.0
        %1184 = vmatprep.subr.mxu0 0.0
        %1185 = vmatpush2.msra.mxu0 0.0
        %1186 = vmatprep.subr.mxu0 0.0
        %1187 = vmatpush2.msra.mxu0 0.0
        %1188 = vmatprep.subr.mxu0 0.0
        %1189 = vmatpush2.msra.mxu0 0.0
        %1190 = vmatprep.subr.mxu0 0.0
        %1191 = vmatpush2.msra.mxu0 0.0
        %1192 = vmatprep.mubr.f32.mxu0 0.0
        %1193 = vmatmul.mubr.f32.gmra.mxu0 %v332
        %v1194 = vpop.f32.mrf.mxu0
        %v1195 = vadd.f32 0.0, %v1194
        %v1196 = vpop.f32.mrf.mxu0
        %1197 = vmatprep.mubr.f32.mxu0 0.0
        %1198 = vmatmul.mubr.f32.gmra.mxu0 %v333
        %v1199 = vpop.f32.mrf.mxu0
        %v1200 = vadd.f32 0.0, %v1199
        %v1201 = vpop.f32.mrf.mxu0
        %1202 = vmatprep.mubr.f32.mxu0 0.0
        %1203 = vmatmul.mubr.f32.gmra.mxu0 %v334
        %v1204 = vpop.f32.mrf.mxu0
        %v1205 = vadd.f32 0.0, %v1204
        %v1206 = vpop.f32.mrf.mxu0
        %1207 = vmatprep.mubr.f32.mxu0 0.0
        %1208 = vmatmul.mubr.f32.gmra.mxu0 %v335
        %v1209 = vpop.f32.mrf.mxu0
        %v1210 = vadd.f32 0.0, %v1209
        %v1211 = vpop.f32.mrf.mxu0
        %1212 = vmatprep.mubr.f32.mxu0 0.0
        %1213 = vmatmul.mubr.f32.gmra.mxu0 %v336
        %v1214 = vpop.f32.mrf.mxu0
        %v1215 = vadd.f32 0.0, %v1214
        %v1216 = vpop.f32.mrf.mxu0
        %1217 = vmatprep.mubr.f32.mxu0 0.0
        %1218 = vmatmul.mubr.f32.gmra.mxu0 %v337
        %v1219 = vpop.f32.mrf.mxu0
        %v1220 = vadd.f32 0.0, %v1219
        %v1221 = vpop.f32.mrf.mxu0
        %1222 = vmatprep.mubr.f32.mxu0 0.0
        %1223 = vmatmul.mubr.f32.gmra.mxu0 %v338
        %v1224 = vpop.f32.mrf.mxu0
        %v1225 = vadd.f32 0.0, %v1224
        %v1226 = vpop.f32.mrf.mxu0
        %1227 = vmatprep.mubr.f32.mxu0 0.0
        %1228 = vmatmul.mubr.f32.gmra.mxu0 %v339
        %v1229 = vpop.f32.mrf.mxu0
        %v1230 = vadd.f32 0.0, %v1229
        %v1231 = vpop.f32.mrf.mxu0
        %1232 = vmatprep.mubr.f32.mxu0 0.0
        %1233 = vmatmul.mubr.f32.gmra.mxu0 %v340
        %v1234 = vpop.f32.mrf.mxu0
        %v1235 = vadd.f32 0.0, %v1234
        %v1236 = vpop.f32.mrf.mxu0
        %1237 = vmatprep.mubr.f32.mxu0 0.0
        %1238 = vmatmul.mubr.f32.gmra.mxu0 %v341
        %v1239 = vpop.f32.mrf.mxu0
        %v1240 = vadd.f32 0.0, %v1239
        %v1241 = vpop.f32.mrf.mxu0
        %1242 = vmatprep.mubr.f32.mxu0 0.0
        %1243 = vmatmul.mubr.f32.gmra.mxu0 %v342
        %v1244 = vpop.f32.mrf.mxu0
        %v1245 = vadd.f32 0.0, %v1244
        %v1246 = vpop.f32.mrf.mxu0
        %1247 = vmatprep.mubr.f32.mxu0 0.0
        %1248 = vmatmul.mubr.f32.gmra.mxu0 %v343
        %v1249 = vpop.f32.mrf.mxu0
        %v1250 = vadd.f32 0.0, %v1249
        %v1251 = vpop.f32.mrf.mxu0
        %1252 = vmatprep.mubr.f32.mxu0 0.0
        %1253 = vmatmul.mubr.f32.gmra.mxu0 %v344
        %v1254 = vpop.f32.mrf.mxu0
        %v1255 = vadd.f32 0.0, %v1254
        %v1256 = vpop.f32.mrf.mxu0
        %1257 = vmatprep.mubr.f32.mxu0 0.0
        %1258 = vmatmul.mubr.f32.gmra.mxu0 %v345
        %v1259 = vpop.f32.mrf.mxu0
        %v1260 = vadd.f32 0.0, %v1259
        %v1261 = vpop.f32.mrf.mxu0
        %1262 = vmatprep.mubr.f32.mxu0 0.0
        %1263 = vmatmul.mubr.f32.gmra.mxu0 %v346
        %v1264 = vpop.f32.mrf.mxu0
        %v1265 = vadd.f32 0.0, %v1264
        %v1266 = vpop.f32.mrf.mxu0
        %1267 = vmatprep.mubr.f32.mxu0 0.0
        %1268 = vmatmul.mubr.f32.gmra.mxu0 %v347
        %v1269 = vpop.f32.mrf.mxu0
        %v1270 = vadd.f32 0.0, %v1269
        %v1271 = vpop.f32.mrf.mxu0
        %1272 = vdwg.mxu0
        %1273 = vmatprep.subr.mxu0 0.0
        %1274 = vmatpush1.msra.mxu0 %v1126
        %1275 = vmatprep.subr.mxu0 0.0
        %1276 = vmatpush1.msra.mxu0 %v1125
        %1277 = vmatprep.subr.mxu0 0.0
        %1278 = vmatpush1.msra.mxu0 %v1124
        %1279 = vmatprep.subr.mxu0 0.0
        %1280 = vmatpush1.msra.mxu0 %v1123
        %1281 = vmatprep.subr.mxu0 0.0
        %1282 = vmatpush1.msra.mxu0 %v1122
        %1283 = vmatprep.subr.mxu0 0.0
        %1284 = vmatpush1.msra.mxu0 %v1121
        %1285 = vmatprep.subr.mxu0 0.0
        %1286 = vmatpush1.msra.mxu0 %v1120
        %1287 = vmatprep.subr.mxu0 0.0
        %1288 = vmatpush1.msra.mxu0 %v1119
        %1289 = vmatprep.subr.mxu0 0.0
        %1290 = vmatpush1.msra.mxu0 %v1118
        %1291 = vmatprep.subr.mxu0 0.0
        %1292 = vmatpush1.msra.mxu0 %v1117
        %1293 = vmatprep.subr.mxu0 0.0
        %1294 = vmatpush1.msra.mxu0 %v1116
        %1295 = vmatprep.subr.mxu0 0.0
        %1296 = vmatpush1.msra.mxu0 %v1115
        %1297 = vmatprep.subr.mxu0 0.0
        %1298 = vmatpush1.msra.mxu0 %v1114
        %1299 = vmatprep.subr.mxu0 0.0
        %1300 = vmatpush1.msra.mxu0 %v1113
        %1301 = vmatprep.subr.mxu0 0.0
        %1302 = vmatpush1.msra.mxu0 %v1112
        %1303 = vmatprep.subr.mxu0 0.0
        %1304 = vmatpush1.msra.mxu0 %v1111
        %1305 = vmatprep.subr.mxu0 0.0
        %1306 = vmatpush2.msra.mxu0 0.0
        %1307 = vmatprep.subr.mxu0 0.0
        %1308 = vmatpush2.msra.mxu0 0.0
        %1309 = vmatprep.subr.mxu0 0.0
        %1310 = vmatpush2.msra.mxu0 0.0
        %1311 = vmatprep.subr.mxu0 0.0
        %1312 = vmatpush2.msra.mxu0 0.0
        %1313 = vmatprep.subr.mxu0 0.0
        %1314 = vmatpush2.msra.mxu0 0.0
        %1315 = vmatprep.subr.mxu0 0.0
        %1316 = vmatpush2.msra.mxu0 0.0
        %1317 = vmatprep.subr.mxu0 0.0
        %1318 = vmatpush2.msra.mxu0 0.0
        %1319 = vmatprep.subr.mxu0 0.0
        %1320 = vmatpush2.msra.mxu0 0.0
        %1321 = vmatprep.subr.mxu0 0.0
        %1322 = vmatpush2.msra.mxu0 0.0
        %1323 = vmatprep.subr.mxu0 0.0
        %1324 = vmatpush2.msra.mxu0 0.0
        %1325 = vmatprep.subr.mxu0 0.0
        %1326 = vmatpush2.msra.mxu0 0.0
        %1327 = vmatprep.subr.mxu0 0.0
        %1328 = vmatpush2.msra.mxu0 0.0
        %1329 = vmatprep.subr.mxu0 0.0
        %1330 = vmatpush2.msra.mxu0 0.0
        %1331 = vmatprep.subr.mxu0 0.0
        %1332 = vmatpush2.msra.mxu0 0.0
        %1333 = vmatprep.subr.mxu0 0.0
        %1334 = vmatpush2.msra.mxu0 0.0
        %1335 = vmatprep.subr.mxu0 0.0
        %1336 = vmatpush2.msra.mxu0 0.0
        %1337 = vmatprep.mubr.f32.mxu0 0.0
        %1338 = vmatmul.mubr.f32.gmra.mxu0 %v348
        %v1339 = vpop.f32.mrf.mxu0
        %v1340 = vadd.f32 0.0, %v1339
        %v1341 = vpop.f32.mrf.mxu0
        %1342 = vmatprep.mubr.f32.mxu0 0.0
        %1343 = vmatmul.mubr.f32.gmra.mxu0 %v349
        %v1344 = vpop.f32.mrf.mxu0
        %v1345 = vadd.f32 0.0, %v1344
        %v1346 = vpop.f32.mrf.mxu0
        %1347 = vmatprep.mubr.f32.mxu0 0.0
        %1348 = vmatmul.mubr.f32.gmra.mxu0 %v350
        %v1349 = vpop.f32.mrf.mxu0
        %v1350 = vadd.f32 0.0, %v1349
        %v1351 = vpop.f32.mrf.mxu0
        %1352 = vmatprep.mubr.f32.mxu0 0.0
        %1353 = vmatmul.mubr.f32.gmra.mxu0 %v351
        %v1354 = vpop.f32.mrf.mxu0
        %v1355 = vadd.f32 0.0, %v1354
        %v1356 = vpop.f32.mrf.mxu0
        %1357 = vmatprep.mubr.f32.mxu0 0.0
        %1358 = vmatmul.mubr.f32.gmra.mxu0 %v352
        %v1359 = vpop.f32.mrf.mxu0
        %v1360 = vadd.f32 0.0, %v1359
        %v1361 = vpop.f32.mrf.mxu0
        %1362 = vmatprep.mubr.f32.mxu0 0.0
        %1363 = vmatmul.mubr.f32.gmra.mxu0 %v353
        %v1364 = vpop.f32.mrf.mxu0
        %v1365 = vadd.f32 0.0, %v1364
        %v1366 = vpop.f32.mrf.mxu0
        %1367 = vmatprep.mubr.f32.mxu0 0.0
        %1368 = vmatmul.mubr.f32.gmra.mxu0 %v354
        %v1369 = vpop.f32.mrf.mxu0
        %v1370 = vadd.f32 0.0, %v1369
        %v1371 = vpop.f32.mrf.mxu0
        %1372 = vmatprep.mubr.f32.mxu0 0.0
        %1373 = vmatmul.mubr.f32.gmra.mxu0 %v355
        %v1374 = vpop.f32.mrf.mxu0
        %v1375 = vadd.f32 0.0, %v1374
        %v1376 = vpop.f32.mrf.mxu0
        %1377 = vmatprep.mubr.f32.mxu0 0.0
        %1378 = vmatmul.mubr.f32.gmra.mxu0 %v356
        %v1379 = vpop.f32.mrf.mxu0
        %v1380 = vadd.f32 0.0, %v1379
        %v1381 = vpop.f32.mrf.mxu0
        %1382 = vmatprep.mubr.f32.mxu0 0.0
        %1383 = vmatmul.mubr.f32.gmra.mxu0 %v357
        %v1384 = vpop.f32.mrf.mxu0
        %v1385 = vadd.f32 0.0, %v1384
        %v1386 = vpop.f32.mrf.mxu0
        %1387 = vmatprep.mubr.f32.mxu0 0.0
        %1388 = vmatmul.mubr.f32.gmra.mxu0 %v358
        %v1389 = vpop.f32.mrf.mxu0
        %v1390 = vadd.f32 0.0, %v1389
        %v1391 = vpop.f32.mrf.mxu0
        %1392 = vmatprep.mubr.f32.mxu0 0.0
        %1393 = vmatmul.mubr.f32.gmra.mxu0 %v359
        %v1394 = vpop.f32.mrf.mxu0
        %v1395 = vadd.f32 0.0, %v1394
        %v1396 = vpop.f32.mrf.mxu0
        %1397 = vmatprep.mubr.f32.mxu0 0.0
        %1398 = vmatmul.mubr.f32.gmra.mxu0 %v360
        %v1399 = vpop.f32.mrf.mxu0
        %v1400 = vadd.f32 0.0, %v1399
        %v1401 = vpop.f32.mrf.mxu0
        %1402 = vmatprep.mubr.f32.mxu0 0.0
        %1403 = vmatmul.mubr.f32.gmra.mxu0 %v361
        %v1404 = vpop.f32.mrf.mxu0
        %v1405 = vadd.f32 0.0, %v1404
        %v1406 = vpop.f32.mrf.mxu0
        %1407 = vmatprep.mubr.f32.mxu0 0.0
        %1408 = vmatmul.mubr.f32.gmra.mxu0 %v362
        %v1409 = vpop.f32.mrf.mxu0
        %v1410 = vadd.f32 0.0, %v1409
        %v1411 = vpop.f32.mrf.mxu0
        %1412 = vmatprep.mubr.f32.mxu0 0.0
        %1413 = vmatmul.mubr.f32.gmra.mxu0 %v363
        %v1414 = vpop.f32.mrf.mxu0
        %v1415 = vadd.f32 0.0, %v1414
        %v1416 = vpop.f32.mrf.mxu0
        %1417 = vdwg.mxu0
        %v1418 = vmax.f32 %v1195, %v1340
        %v1419 = vmax.f32 %v1200, %v1345
        %v1420 = vmax.f32 %v1205, %v1350
        %v1421 = vmax.f32 %v1210, %v1355
        %v1422 = vmax.f32 %v1215, %v1360
        %v1423 = vmax.f32 %v1220, %v1365
        %v1424 = vmax.f32 %v1225, %v1370
        %v1425 = vmax.f32 %v1230, %v1375
        %v1426 = vmax.f32 %v1235, %v1380
        %v1427 = vmax.f32 %v1240, %v1385
        %v1428 = vmax.f32 %v1245, %v1390
        %v1429 = vmax.f32 %v1250, %v1395
        %v1430 = vmax.f32 %v1255, %v1400
        %v1431 = vmax.f32 %v1260, %v1405
        %v1432 = vmax.f32 %v1265, %v1410
        %v1433 = vmax.f32 %v1270, %v1415
        %1434 = vmatprep.subr.mxu0 0.0
        %1435 = vmatpush1.msra.mxu0 %v1126
        %1436 = vmatprep.subr.mxu0 0.0
        %1437 = vmatpush1.msra.mxu0 %v1125
        %1438 = vmatprep.subr.mxu0 0.0
        %1439 = vmatpush1.msra.mxu0 %v1124
        %1440 = vmatprep.subr.mxu0 0.0
        %1441 = vmatpush1.msra.mxu0 %v1123
        %1442 = vmatprep.subr.mxu0 0.0
        %1443 = vmatpush1.msra.mxu0 %v1122
        %1444 = vmatprep.subr.mxu0 0.0
        %1445 = vmatpush1.msra.mxu0 %v1121
        %1446 = vmatprep.subr.mxu0 0.0
        %1447 = vmatpush1.msra.mxu0 %v1120
        %1448 = vmatprep.subr.mxu0 0.0
        %1449 = vmatpush1.msra.mxu0 %v1119
        %1450 = vmatprep.subr.mxu0 0.0
        %1451 = vmatpush1.msra.mxu0 %v1118
        %1452 = vmatprep.subr.mxu0 0.0
        %1453 = vmatpush1.msra.mxu0 %v1117
        %1454 = vmatprep.subr.mxu0 0.0
        %1455 = vmatpush1.msra.mxu0 %v1116
        %1456 = vmatprep.subr.mxu0 0.0
        %1457 = vmatpush1.msra.mxu0 %v1115
        %1458 = vmatprep.subr.mxu0 0.0
        %1459 = vmatpush1.msra.mxu0 %v1114
        %1460 = vmatprep.subr.mxu0 0.0
        %1461 = vmatpush1.msra.mxu0 %v1113
        %1462 = vmatprep.subr.mxu0 0.0
        %1463 = vmatpush1.msra.mxu0 %v1112
        %1464 = vmatprep.subr.mxu0 0.0
        %1465 = vmatpush1.msra.mxu0 %v1111
        %1466 = vmatprep.subr.mxu0 0.0
        %1467 = vmatpush2.msra.mxu0 0.0
        %1468 = vmatprep.subr.mxu0 0.0
        %1469 = vmatpush2.msra.mxu0 0.0
        %1470 = vmatprep.subr.mxu0 0.0
        %1471 = vmatpush2.msra.mxu0 0.0
        %1472 = vmatprep.subr.mxu0 0.0
        %1473 = vmatpush2.msra.mxu0 0.0
        %1474 = vmatprep.subr.mxu0 0.0
        %1475 = vmatpush2.msra.mxu0 0.0
        %1476 = vmatprep.subr.mxu0 0.0
        %1477 = vmatpush2.msra.mxu0 0.0
        %1478 = vmatprep.subr.mxu0 0.0
        %1479 = vmatpush2.msra.mxu0 0.0
        %1480 = vmatprep.subr.mxu0 0.0
        %1481 = vmatpush2.msra.mxu0 0.0
        %1482 = vmatprep.subr.mxu0 0.0
        %1483 = vmatpush2.msra.mxu0 0.0
        %1484 = vmatprep.subr.mxu0 0.0
        %1485 = vmatpush2.msra.mxu0 0.0
        %1486 = vmatprep.subr.mxu0 0.0
        %1487 = vmatpush2.msra.mxu0 0.0
        %1488 = vmatprep.subr.mxu0 0.0
        %1489 = vmatpush2.msra.mxu0 0.0
        %1490 = vmatprep.subr.mxu0 0.0
        %1491 = vmatpush2.msra.mxu0 0.0
        %1492 = vmatprep.subr.mxu0 0.0
        %1493 = vmatpush2.msra.mxu0 0.0
        %1494 = vmatprep.subr.mxu0 0.0
        %1495 = vmatpush2.msra.mxu0 0.0
        %1496 = vmatprep.subr.mxu0 0.0
        %1497 = vmatpush2.msra.mxu0 0.0
        %1498 = vmatprep.mubr.f32.mxu0 0.0
        %1499 = vmatmul.mubr.f32.gmra.mxu0 %v364
        %v1500 = vpop.f32.mrf.mxu0
        %v1501 = vadd.f32 0.0, %v1500
        %v1502 = vpop.f32.mrf.mxu0
        %1503 = vmatprep.mubr.f32.mxu0 0.0
        %1504 = vmatmul.mubr.f32.gmra.mxu0 %v365
        %v1505 = vpop.f32.mrf.mxu0
        %v1506 = vadd.f32 0.0, %v1505
        %v1507 = vpop.f32.mrf.mxu0
        %1508 = vmatprep.mubr.f32.mxu0 0.0
        %1509 = vmatmul.mubr.f32.gmra.mxu0 %v366
        %v1510 = vpop.f32.mrf.mxu0
        %v1511 = vadd.f32 0.0, %v1510
        %v1512 = vpop.f32.mrf.mxu0
        %1513 = vmatprep.mubr.f32.mxu0 0.0
        %1514 = vmatmul.mubr.f32.gmra.mxu0 %v367
        %v1515 = vpop.f32.mrf.mxu0
        %v1516 = vadd.f32 0.0, %v1515
        %v1517 = vpop.f32.mrf.mxu0
        %1518 = vmatprep.mubr.f32.mxu0 0.0
        %1519 = vmatmul.mubr.f32.gmra.mxu0 %v368
        %v1520 = vpop.f32.mrf.mxu0
        %v1521 = vadd.f32 0.0, %v1520
        %v1522 = vpop.f32.mrf.mxu0
        %1523 = vmatprep.mubr.f32.mxu0 0.0
        %1524 = vmatmul.mubr.f32.gmra.mxu0 %v369
        %v1525 = vpop.f32.mrf.mxu0
        %v1526 = vadd.f32 0.0, %v1525
        %v1527 = vpop.f32.mrf.mxu0
        %1528 = vmatprep.mubr.f32.mxu0 0.0
        %1529 = vmatmul.mubr.f32.gmra.mxu0 %v370
        %v1530 = vpop.f32.mrf.mxu0
        %v1531 = vadd.f32 0.0, %v1530
        %v1532 = vpop.f32.mrf.mxu0
        %1533 = vmatprep.mubr.f32.mxu0 0.0
        %1534 = vmatmul.mubr.f32.gmra.mxu0 %v371
        %v1535 = vpop.f32.mrf.mxu0
        %v1536 = vadd.f32 0.0, %v1535
        %v1537 = vpop.f32.mrf.mxu0
        %1538 = vmatprep.mubr.f32.mxu0 0.0
        %1539 = vmatmul.mubr.f32.gmra.mxu0 %v372
        %v1540 = vpop.f32.mrf.mxu0
        %v1541 = vadd.f32 0.0, %v1540
        %v1542 = vpop.f32.mrf.mxu0
        %1543 = vmatprep.mubr.f32.mxu0 0.0
        %1544 = vmatmul.mubr.f32.gmra.mxu0 %v373
        %v1545 = vpop.f32.mrf.mxu0
        %v1546 = vadd.f32 0.0, %v1545
        %v1547 = vpop.f32.mrf.mxu0
        %1548 = vmatprep.mubr.f32.mxu0 0.0
        %1549 = vmatmul.mubr.f32.gmra.mxu0 %v374
        %v1550 = vpop.f32.mrf.mxu0
        %v1551 = vadd.f32 0.0, %v1550
        %v1552 = vpop.f32.mrf.mxu0
        %1553 = vmatprep.mubr.f32.mxu0 0.0
        %1554 = vmatmul.mubr.f32.gmra.mxu0 %v375
        %v1555 = vpop.f32.mrf.mxu0
        %v1556 = vadd.f32 0.0, %v1555
        %v1557 = vpop.f32.mrf.mxu0
        %1558 = vmatprep.mubr.f32.mxu0 0.0
        %1559 = vmatmul.mubr.f32.gmra.mxu0 %v376
        %v1560 = vpop.f32.mrf.mxu0
        %v1561 = vadd.f32 0.0, %v1560
        %v1562 = vpop.f32.mrf.mxu0
        %1563 = vmatprep.mubr.f32.mxu0 0.0
        %1564 = vmatmul.mubr.f32.gmra.mxu0 %v377
        %v1565 = vpop.f32.mrf.mxu0
        %v1566 = vadd.f32 0.0, %v1565
        %v1567 = vpop.f32.mrf.mxu0
        %1568 = vmatprep.mubr.f32.mxu0 0.0
        %1569 = vmatmul.mubr.f32.gmra.mxu0 %v378
        %v1570 = vpop.f32.mrf.mxu0
        %v1571 = vadd.f32 0.0, %v1570
        %v1572 = vpop.f32.mrf.mxu0
        %1573 = vmatprep.mubr.f32.mxu0 0.0
        %1574 = vmatmul.mubr.f32.gmra.mxu0 %v379
        %v1575 = vpop.f32.mrf.mxu0
        %v1576 = vadd.f32 0.0, %v1575
        %v1577 = vpop.f32.mrf.mxu0
        %1578 = vdwg.mxu0
        %v1579 = vmax.f32 %v1418, %v1501
        %v1580 = vmax.f32 %v1419, %v1506
        %v1581 = vmax.f32 %v1420, %v1511
        %v1582 = vmax.f32 %v1421, %v1516
        %v1583 = vmax.f32 %v1422, %v1521
        %v1584 = vmax.f32 %v1423, %v1526
        %v1585 = vmax.f32 %v1424, %v1531
        %v1586 = vmax.f32 %v1425, %v1536
        %v1587 = vmax.f32 %v1426, %v1541
        %v1588 = vmax.f32 %v1427, %v1546
        %v1589 = vmax.f32 %v1428, %v1551
        %v1590 = vmax.f32 %v1429, %v1556
        %v1591 = vmax.f32 %v1430, %v1561
        %v1592 = vmax.f32 %v1431, %v1566
        %v1593 = vmax.f32 %v1432, %v1571
        %v1594 = vmax.f32 %v1433, %v1576
        %1595 = vmatprep.subr.mxu0 0.0
        %1596 = vmatpush1.msra.mxu0 %v1126
        %1597 = vmatprep.subr.mxu0 0.0
        %1598 = vmatpush1.msra.mxu0 %v1125
        %1599 = vmatprep.subr.mxu0 0.0
        %1600 = vmatpush1.msra.mxu0 %v1124
        %1601 = vmatprep.subr.mxu0 0.0
        %1602 = vmatpush1.msra.mxu0 %v1123
        %1603 = vmatprep.subr.mxu0 0.0
        %1604 = vmatpush1.msra.mxu0 %v1122
        %1605 = vmatprep.subr.mxu0 0.0
        %1606 = vmatpush1.msra.mxu0 %v1121
        %1607 = vmatprep.subr.mxu0 0.0
        %1608 = vmatpush1.msra.mxu0 %v1120
        %1609 = vmatprep.subr.mxu0 0.0
        %1610 = vmatpush1.msra.mxu0 %v1119
        %1611 = vmatprep.subr.mxu0 0.0
        %1612 = vmatpush1.msra.mxu0 %v1118
        %1613 = vmatprep.subr.mxu0 0.0
        %1614 = vmatpush1.msra.mxu0 %v1117
        %1615 = vmatprep.subr.mxu0 0.0
        %1616 = vmatpush1.msra.mxu0 %v1116
        %1617 = vmatprep.subr.mxu0 0.0
        %1618 = vmatpush1.msra.mxu0 %v1115
        %1619 = vmatprep.subr.mxu0 0.0
        %1620 = vmatpush1.msra.mxu0 %v1114
        %1621 = vmatprep.subr.mxu0 0.0
        %1622 = vmatpush1.msra.mxu0 %v1113
        %1623 = vmatprep.subr.mxu0 0.0
        %1624 = vmatpush1.msra.mxu0 %v1112
        %1625 = vmatprep.subr.mxu0 0.0
        %1626 = vmatpush1.msra.mxu0 %v1111
        %1627 = vmatprep.subr.mxu0 0.0
        %1628 = vmatpush2.msra.mxu0 0.0
        %1629 = vmatprep.subr.mxu0 0.0
        %1630 = vmatpush2.msra.mxu0 0.0
        %1631 = vmatprep.subr.mxu0 0.0
        %1632 = vmatpush2.msra.mxu0 0.0
        %1633 = vmatprep.subr.mxu0 0.0
        %1634 = vmatpush2.msra.mxu0 0.0
        %1635 = vmatprep.subr.mxu0 0.0
        %1636 = vmatpush2.msra.mxu0 0.0
        %1637 = vmatprep.subr.mxu0 0.0
        %1638 = vmatpush2.msra.mxu0 0.0
        %1639 = vmatprep.subr.mxu0 0.0
        %1640 = vmatpush2.msra.mxu0 0.0
        %1641 = vmatprep.subr.mxu0 0.0
        %1642 = vmatpush2.msra.mxu0 0.0
        %1643 = vmatprep.subr.mxu0 0.0
        %1644 = vmatpush2.msra.mxu0 0.0
        %1645 = vmatprep.subr.mxu0 0.0
        %1646 = vmatpush2.msra.mxu0 0.0
        %1647 = vmatprep.subr.mxu0 0.0
        %1648 = vmatpush2.msra.mxu0 0.0
        %1649 = vmatprep.subr.mxu0 0.0
        %1650 = vmatpush2.msra.mxu0 0.0
        %1651 = vmatprep.subr.mxu0 0.0
        %1652 = vmatpush2.msra.mxu0 0.0
        %1653 = vmatprep.subr.mxu0 0.0
        %1654 = vmatpush2.msra.mxu0 0.0
        %1655 = vmatprep.subr.mxu0 0.0
        %1656 = vmatpush2.msra.mxu0 0.0
        %1657 = vmatprep.subr.mxu0 0.0
        %1658 = vmatpush2.msra.mxu0 0.0
        %1659 = vmatprep.mubr.f32.mxu0 0.0
        %1660 = vmatmul.mubr.f32.gmra.mxu0 %v380
        %v1661 = vpop.f32.mrf.mxu0
        %v1662 = vadd.f32 0.0, %v1661
        %v1663 = vpop.f32.mrf.mxu0
        %1664 = vmatprep.mubr.f32.mxu0 0.0
        %1665 = vmatmul.mubr.f32.gmra.mxu0 %v381
        %v1666 = vpop.f32.mrf.mxu0
        %v1667 = vadd.f32 0.0, %v1666
        %v1668 = vpop.f32.mrf.mxu0
        %1669 = vmatprep.mubr.f32.mxu0 0.0
        %1670 = vmatmul.mubr.f32.gmra.mxu0 %v382
        %v1671 = vpop.f32.mrf.mxu0
        %v1672 = vadd.f32 0.0, %v1671
        %v1673 = vpop.f32.mrf.mxu0
        %1674 = vmatprep.mubr.f32.mxu0 0.0
        %1675 = vmatmul.mubr.f32.gmra.mxu0 %v383
        %v1676 = vpop.f32.mrf.mxu0
        %v1677 = vadd.f32 0.0, %v1676
        %v1678 = vpop.f32.mrf.mxu0
        %1679 = vmatprep.mubr.f32.mxu0 0.0
        %1680 = vmatmul.mubr.f32.gmra.mxu0 %v384
        %v1681 = vpop.f32.mrf.mxu0
        %v1682 = vadd.f32 0.0, %v1681
        %v1683 = vpop.f32.mrf.mxu0
        %1684 = vmatprep.mubr.f32.mxu0 0.0
        %1685 = vmatmul.mubr.f32.gmra.mxu0 %v385
        %v1686 = vpop.f32.mrf.mxu0
        %v1687 = vadd.f32 0.0, %v1686
        %v1688 = vpop.f32.mrf.mxu0
        %1689 = vmatprep.mubr.f32.mxu0 0.0
        %1690 = vmatmul.mubr.f32.gmra.mxu0 %v386
        %v1691 = vpop.f32.mrf.mxu0
        %v1692 = vadd.f32 0.0, %v1691
        %v1693 = vpop.f32.mrf.mxu0
        %1694 = vmatprep.mubr.f32.mxu0 0.0
        %1695 = vmatmul.mubr.f32.gmra.mxu0 %v387
        %v1696 = vpop.f32.mrf.mxu0
        %v1697 = vadd.f32 0.0, %v1696
        %v1698 = vpop.f32.mrf.mxu0
        %1699 = vmatprep.mubr.f32.mxu0 0.0
        %1700 = vmatmul.mubr.f32.gmra.mxu0 %v388
        %v1701 = vpop.f32.mrf.mxu0
        %v1702 = vadd.f32 0.0, %v1701
        %v1703 = vpop.f32.mrf.mxu0
        %1704 = vmatprep.mubr.f32.mxu0 0.0
        %1705 = vmatmul.mubr.f32.gmra.mxu0 %v389
        %v1706 = vpop.f32.mrf.mxu0
        %v1707 = vadd.f32 0.0, %v1706
        %v1708 = vpop.f32.mrf.mxu0
        %1709 = vmatprep.mubr.f32.mxu0 0.0
        %1710 = vmatmul.mubr.f32.gmra.mxu0 %v390
        %v1711 = vpop.f32.mrf.mxu0
        %v1712 = vadd.f32 0.0, %v1711
        %v1713 = vpop.f32.mrf.mxu0
        %1714 = vmatprep.mubr.f32.mxu0 0.0
        %1715 = vmatmul.mubr.f32.gmra.mxu0 %v391
        %v1716 = vpop.f32.mrf.mxu0
        %v1717 = vadd.f32 0.0, %v1716
        %v1718 = vpop.f32.mrf.mxu0
        %1719 = vmatprep.mubr.f32.mxu0 0.0
        %1720 = vmatmul.mubr.f32.gmra.mxu0 %v392
        %v1721 = vpop.f32.mrf.mxu0
        %v1722 = vadd.f32 0.0, %v1721
        %v1723 = vpop.f32.mrf.mxu0
        %1724 = vmatprep.mubr.f32.mxu0 0.0
        %1725 = vmatmul.mubr.f32.gmra.mxu0 %v393
        %v1726 = vpop.f32.mrf.mxu0
        %v1727 = vadd.f32 0.0, %v1726
        %v1728 = vpop.f32.mrf.mxu0
        %1729 = vmatprep.mubr.f32.mxu0 0.0
        %1730 = vmatmul.mubr.f32.gmra.mxu0 %v394
        %v1731 = vpop.f32.mrf.mxu0
        %v1732 = vadd.f32 0.0, %v1731
        %v1733 = vpop.f32.mrf.mxu0
        %1734 = vmatprep.mubr.f32.mxu0 0.0
        %1735 = vmatmul.mubr.f32.gmra.mxu0 %v395
        %v1736 = vpop.f32.mrf.mxu0
        %v1737 = vadd.f32 0.0, %v1736
        %v1738 = vpop.f32.mrf.mxu0
        %1739 = vdwg.mxu0
        %v1740 = vmax.f32 %v1579, %v1662
        %v1741 = vmax.f32 %v1580, %v1667
        %v1742 = vmax.f32 %v1581, %v1672
        %v1743 = vmax.f32 %v1582, %v1677
        %v1744 = vmax.f32 %v1583, %v1682
        %v1745 = vmax.f32 %v1584, %v1687
        %v1746 = vmax.f32 %v1585, %v1692
        %v1747 = vmax.f32 %v1586, %v1697
        %v1748 = vmax.f32 %v1587, %v1702
        %v1749 = vmax.f32 %v1588, %v1707
        %v1750 = vmax.f32 %v1589, %v1712
        %v1751 = vmax.f32 %v1590, %v1717
        %v1752 = vmax.f32 %v1591, %v1722
        %v1753 = vmax.f32 %v1592, %v1727
        %v1754 = vmax.f32 %v1593, %v1732
        %v1755 = vmax.f32 %v1594, %v1737
        %v1757 = vlaneseq
        %v1758 = vshrl.u32 %v1757, 7
        %v1759 = vsub.s32 0, %v1758
        %v1760 = vrot.slane %v1127, %v1759
        %v1762 = vadd.f32 %v1740, %v1760
        %v1763 = vadd.f32 %v1741, %v1760
        %v1764 = vadd.f32 %v1742, %v1760
        %v1765 = vadd.f32 %v1743, %v1760
        %v1766 = vadd.f32 %v1744, %v1760
        %v1767 = vadd.f32 %v1745, %v1760
        %v1768 = vadd.f32 %v1746, %v1760
        %v1769 = vadd.f32 %v1747, %v1760
        %v1770 = vadd.f32 %v1748, %v1760
        %v1771 = vadd.f32 %v1749, %v1760
        %v1772 = vadd.f32 %v1750, %v1760
        %v1773 = vadd.f32 %v1751, %v1760
        %v1774 = vadd.f32 %v1752, %v1760
        %v1775 = vadd.f32 %v1753, %v1760
        %v1776 = vadd.f32 %v1754, %v1760
        %v1777 = vadd.f32 %v1755, %v1760
        %1778 = vst [vmem:[%s329] sm:$0xff] %v1762
        %1779 = vst [vmem:[%s329 + $0x8] sm:$0xff] %v1763
        %1780 = vst [vmem:[%s329 + $0x10] sm:$0xff] %v1764
        %1781 = vst [vmem:[%s329 + $0x18] sm:$0xff] %v1765
        %1782 = vst [vmem:[%s329 + $0x20] sm:$0xff] %v1766
        %1783 = vst [vmem:[%s329 + $0x28] sm:$0xff] %v1767
        %1784 = vst [vmem:[%s329 + $0x30] sm:$0xff] %v1768
        %1785 = vst [vmem:[%s329 + $0x38] sm:$0xff] %v1769
        %1786 = vst [vmem:[%s329 + $0x40] sm:$0xff] %v1770
        %1787 = vst [vmem:[%s329 + $0x48] sm:$0xff] %v1771
        %1788 = vst [vmem:[%s329 + $0x50] sm:$0xff] %v1772
        %1789 = vst [vmem:[%s329 + $0x58] sm:$0xff] %v1773
        %1790 = vst [vmem:[%s329 + $0x60] sm:$0xff] %v1774
        %1791 = vst [vmem:[%s329 + $0x68] sm:$0xff] %v1775
        %1792 = vst [vmem:[%s329 + $0x70] sm:$0xff] %v1776
        %1793 = vst [vmem:[%s329 + $0x78] sm:$0xff] %v1777
        %s1794 = sand.u32 %s162, 1
        %s1795 = scalar_lea.sflag [#allocation4], %s1794
        %s1796 = sand.u32 %s162, 1
        %s1797 = smul.addr %s1796, 128
        %s1798 = scalar_lea.vmem [#allocation8], %s1797
        %s1799 = sand.u32 %s190, 1
        %s1800 = scalar_lea.sflag [#allocation10], %s1799
        %s1801 = sand.u32 %s190, 1
        %s1802 = smul.addr %s1801, 128
        %s1803 = scalar_lea.vmem [#allocation9], %s1802
        // Predicated region
        $region53: #{tpu_custom_call.1} parent=39 // pred_check
          %p1804 = pneg %p172
        $region54: #{tpu_custom_call.1} parent=39 // pred_check_branch
          %1806 = sbr.rel (%p1804) target = $region56
        $region55: #{tpu_custom_call.1} parent=39 // pred_region
          %s1808 = ssub.s32 2048, 2048
          %1809 = vsyncadd %s1795, %s1808
          %s1810 = smul.addr %s32, 16
          %s1811 = sadd.s32 %s33, %s1810
          %s1812 = smul.addr %s1811, 128
          %s1813 = scalar_lea.hbm %s5, %s1812
          %s1814 = sshll.u32 %s1798, 4
          %s1815 = int_to_ptr.vmem [resolvable:$true] %s1814
          %1820 = dma.vmem_to_hbm [thread:$0]  %s1815, 2048, %s1813, %s1795, 128, 128, 8
        $region56: #{tpu_custom_call.1} parent=39 // pred_fallthru
          _
        // Predicated region
        $region57: #{tpu_custom_call.1} parent=39 // pred_check
          %p1821 = pneg %p200
        $region58: #{tpu_custom_call.1} parent=39 // pred_check_branch
          %1823 = sbr.rel (%p1821) target = $region60
        $region59: #{tpu_custom_call.1} parent=39 // pred_region
          %s1824 = smul.u32 16, %s33
          %s1826 = ssub.s32 2048, 2048
          %1827 = vsyncadd %s1800, %s1826
          %s1828 = smul.addr %s32, 16
          %s1829 = sadd.s32 %s1824, %s1828
          %s1830 = smul.addr %s1829, 128
          %s1831 = scalar_lea.hbm %s6, %s1830
          %s1832 = sshll.u32 %s1803, 4
          %s1833 = int_to_ptr.vmem [resolvable:$true] %s1832
          %1838 = dma.vmem_to_hbm [thread:$0]  %s1833, 2048, %s1831, %s1800, 128, 128, 8
        $region60: #{tpu_custom_call.1} parent=39 // pred_fallthru
          _
      $region40: #{tpu_custom_call.1} parent=5 // pred_fallthru
        _
      %p1839 = scmp.le.s32.totalorder 2, %s23
      // Predicated region
      $region61: #{tpu_custom_call.1} parent=5 // pred_check
        %p1840 = pneg %p1839
      $region62: #{tpu_custom_call.1} parent=5 // pred_check_branch
        %1842 = sbr.rel (%p1840) target = $region64
      $region63: #{tpu_custom_call.1} parent=5 // pred_region
        %s1843 = ssub.s32 %s23, 2
        // Predicated region
        $region65: #{tpu_custom_call.1} parent=63 // pred_check
          %p1844 = pneg %p178
        $region66: #{tpu_custom_call.1} parent=63 // pred_check_branch
          %1846 = sbr.rel (%p1844) target = $region68
        $region67: #{tpu_custom_call.1} parent=63 // pred_region
          %s1847 = sand.u32 %s163, 1
          %s1848 = scalar_lea.sflag [#allocation4], %s1847
          %s1849 = sand.u32 %s163, 1
          %s1850 = smul.addr %s1849, 128
          %s1851 = scalar_lea.vmem [#allocation8], %s1850
          %1852 = dma.done %s1848, 2048
        $region68: #{tpu_custom_call.1} parent=63 // pred_fallthru
          _
        // Predicated region
        $region69: #{tpu_custom_call.1} parent=63 // pred_check
          %p1853 = pneg %p206
        $region70: #{tpu_custom_call.1} parent=63 // pred_check_branch
          %1855 = sbr.rel (%p1853) target = $region72
        $region71: #{tpu_custom_call.1} parent=63 // pred_region
          %s1856 = sand.u32 %s191, 1
          %s1857 = scalar_lea.sflag [#allocation10], %s1856
          %s1858 = sand.u32 %s191, 1
          %s1859 = smul.addr %s1858, 128
          %s1860 = scalar_lea.vmem [#allocation9], %s1859
          %1861 = dma.done %s1857, 2048
        $region72: #{tpu_custom_call.1} parent=63 // pred_fallthru
          _
      $region64: #{tpu_custom_call.1} parent=5 // pred_fallthru
        _
    $region6: #{tpu_custom_call.1} parent=1 // loop_footer
      %s27 = sadd.s32 1, %s23
    $region7: #{tpu_custom_call.1} parent=1 // loop_footer_branch
      %22 = sbr.rel target = $region3
    $region8: #{tpu_custom_call.1} parent=1 // loop_exit
      _
    %1862 = vsyncpa [#allocation3], 1
    %s1863 = scalar_lea.sflag [#allocation3], 1
    %1864 = vsyncpa %s1863, 1
    %1865 = vsyncpa [#allocation6], 1
    %1866 = vsyncpa [#allocation4], 1
    %s1867 = scalar_lea.sflag [#allocation4], 1
    %1868 = vsyncpa %s1867, 1
    %1869 = vsyncpa [#allocation10], 1
    %s1870 = scalar_lea.sflag [#allocation10], 1
    %1871 = vsyncpa %s1870, 1

</llo_original>
